<compile_context>
chip_gen: v7x
topology: tpu7x:2x2x1
jax: 0.10.0
libtpu: 0.0.40
codegen_flags: <defaults>
</compile_context>

<pallas_src>
import functools
import numpy as np
import jax
import jax.numpy as jnp
from jax import lax
from jax.experimental import pallas as pl
from jax.experimental.pallas import tpu as pltpu

EPS = 1e-5


def _bn_packed(y, pmat, gamma, beta, inv_count):
    """Training-mode BatchNorm on a packed (N*H, W*C) activation.

    pmat is (W*C, W*C) with pmat[i, j] = (i % C == j % C); one matmul against it folds
    the W lane-groups of each channel and re-broadcasts the per-channel partial sums to
    every lane, so the stats need a single pass over y (E[x^2] - E[x]^2, biased var).
    """
    zsum = jnp.sum(jnp.dot(y, pmat, preferred_element_type=jnp.float32),
                   axis=0, keepdims=True) * inv_count            # E[x]   (1, W*C)
    zsq = jnp.sum(jnp.dot(y * y, pmat, preferred_element_type=jnp.float32),
                  axis=0, keepdims=True) * inv_count             # E[x^2] (1, W*C)
    var = zsq - zsum * zsum
    return (y - zsum) * (gamma * lax.rsqrt(var + EPS)) + beta


def basic_block_kernel(x_sh_ref, w1_ref, w2_ref, d_ref, wsc_ref, pmat_ref,
                       g1_ref, be1_ref, g2_ref, be2_ref, gs_ref, bes_ref,
                       out_ref, *, inv_count):
    # x_sh_ref : (3, N*H, W*Ci) bf16  input pre-shifted by dy=-1,0,+1 (rows), packed
    #                                 (rows, W*Ci), zeros at top/bottom image border.
    # w1_ref   : (3, W*Ci, W*Co) bf16 conv1 block-banded weights, one per vertical tap.
    # w2_ref   : (3, W*Co, W*Co) bf16 conv2 block-banded weights.
    # d_ref    : (3, N*H, N*H)  bf16  0/1 row-shift matrices for conv2's vertical taps.
    # wsc_ref  : (W*Ci, W*Co)   bf16  1x1 shortcut conv as a block-diagonal matrix.
    # pmat_ref : (W*Co, W*Co)   f32   channel-fold matrix for packed BatchNorm stats.
    # g*/be*   : (1, W*Co)      f32   BN gamma/beta tiled over W.
    # out_ref  : (N*H, W*Co)    f32   lane-dense packed output.
    pmat = pmat_ref[...]

    # ---- conv1: 3x3, stride 1, pad 1 -> 3 matmuls ----
    acc1 = jnp.dot(x_sh_ref[0], w1_ref[0], preferred_element_type=jnp.float32)
    acc1 += jnp.dot(x_sh_ref[1], w1_ref[1], preferred_element_type=jnp.float32)
    acc1 += jnp.dot(x_sh_ref[2], w1_ref[2], preferred_element_type=jnp.float32)
    # (conv bias omitted: exactly cancelled by the BN mean subtraction)
    y1 = jnp.maximum(_bn_packed(acc1, pmat, g1_ref[...], be1_ref[...], inv_count), 0.0)

    # ---- conv2: 3x3 on the in-kernel activation; vertical taps via 0/1 shift matmuls ----
    y1b = y1.astype(jnp.bfloat16)
    acc2 = jnp.dot(y1b, w2_ref[1], preferred_element_type=jnp.float32)      # dy = 0
    for ky in (0, 2):                                                       # dy = -1, +1
        sh = jnp.dot(d_ref[ky], y1b,
                     preferred_element_type=jnp.float32).astype(jnp.bfloat16)
        acc2 += jnp.dot(sh, w2_ref[ky], preferred_element_type=jnp.float32)
    y2 = _bn_packed(acc2, pmat, g2_ref[...], be2_ref[...], inv_count)

    # ---- shortcut: 1x1 conv (bias=False) + BN on the unshifted packed input ----
    accs = jnp.dot(x_sh_ref[1], wsc_ref[...], preferred_element_type=jnp.float32)
    ys = _bn_packed(accs, pmat, gs_ref[...], bes_ref[...], inv_count)

    # residual add + final ReLU, stored lane-dense
    out_ref[...] = jnp.maximum(y2 + ys, 0.0)


# ----------------------------- wrapper-side packing -----------------------------

def _pack_conv3x3(w_hwio, W):
    """(3,3,Ci,Co) HWIO conv weights -> (3, W*Ci, W*Co) block-banded matrices (one per
    vertical tap); horizontal taps + left/right zero padding folded into the bands."""
    _, _, ci, co = w_hwio.shape
    wi = jnp.arange(W)[:, None]     # w_in
    wo = jnp.arange(W)[None, :]     # w_out
    mats = []
    for ky in range(3):
        m = jnp.zeros((W, ci, W, co), jnp.float32)
        for kx in range(3):
            sel = (wi == wo + (kx - 1)).astype(jnp.float32)                 # (W, W)
            m = m + sel[:, None, :, None] * w_hwio[ky, kx][None, :, None, :]
        mats.append(m.reshape(W * ci, W * co))
    return jnp.stack(mats).astype(jnp.bfloat16)


def _pack_conv1x1(w_io, W):
    ci, co = w_io.shape
    sel = (jnp.arange(W)[:, None] == jnp.arange(W)[None, :]).astype(jnp.float32)
    m = sel[:, None, :, None] * w_io[None, :, None, :]
    return m.reshape(W * ci, W * co).astype(jnp.bfloat16)


def _row_shift_mats(N, H):
    """0/1 matrices S_dy with (S_dy @ y)[r] = y[r + dy] within the same image, else 0."""
    nh = N * H
    ro = jnp.arange(nh)[:, None]
    ri = jnp.arange(nh)[None, :]
    h = ro % H
    mats = []
    for dy in (-1, 0, 1):
        valid = (h + dy >= 0) & (h + dy < H)
        mats.append(((ri == ro + dy) & valid).astype(jnp.float32))
    return jnp.stack(mats).astype(jnp.bfloat16)


def basic_block_forward(x_nchw, p):
    """BasicBlock(in_ch, out_ch, stride=1, downsample=True).forward(x), training-mode BN."""
    # TODO(synk): stride != 1 not implemented (this config uses stride=1).
    # TODO(synk): BatchNorm running-stat updates (training side effect) are not emitted.
    # TODO(synk): for real ResNet shapes add a grid over N / H-row tiles (1-row halo) with
    #             folded or two-pass BN so the block fits v7x's 64 MiB VMEM and can use
    #             dimension_semantics=("parallel", ...); at this toy size the whole problem
    #             is a few tens of KB so a single grid-free call is best.
    N, Ci, H, W = x_nchw.shape
    Co = p["w1"].shape[-1]
    nh, lx, ly = N * H, W * Ci, W * Co

    x_nhwc = jnp.transpose(x_nchw, (0, 2, 3, 1)).astype(jnp.float32)
    # pre-shifted (dy = -1, 0, +1) packed inputs, zero at the top/bottom image border
    xp_h = jnp.pad(x_nhwc, ((0, 0), (1, 1), (0, 0), (0, 0)))
    x_sh = jnp.stack([xp_h[:, ky:ky + H].reshape(nh, lx) for ky in range(3)])
    x_sh = x_sh.astype(jnp.bfloat16)

    w1 = _pack_conv3x3(p["w1"], W)            # (3, W*Ci, W*Co)
    w2 = _pack_conv3x3(p["w2"], W)            # (3, W*Co, W*Co)
    wsc = _pack_conv1x1(p["ws"], W)           # (W*Ci, W*Co)
    dmat = _row_shift_mats(N, H)              # (3, N*H, N*H)

    lane_c = jnp.arange(ly) % Co
    pmat = (lane_c[:, None] == lane_c[None, :]).astype(jnp.float32)   # (W*Co, W*Co)

    def tile_c(v):                            # per-channel -> packed (1, W*Co)
        return jnp.tile(v.astype(jnp.float32), W).reshape(1, ly)

    args = (x_sh, w1, w2, dmat, wsc, pmat,
            tile_c(p["g1"]), tile_c(p["be1"]),
            tile_c(p["g2"]), tile_c(p["be2"]),
            tile_c(p["gs"]), tile_c(p["bes"]))

    vmem = pl.BlockSpec(memory_space=pltpu.MemorySpace.VMEM)
    out_pack = pl.pallas_call(
        functools.partial(basic_block_kernel, inv_count=1.0 / (N * H * W)),
        out_shape=jax.ShapeDtypeStruct((nh, ly), jnp.float32),
        in_specs=[vmem] * len(args),
        out_specs=vmem,
    )(*args)

    out = out_pack.reshape(N, H, W, Co)
    return jnp.transpose(out, (0, 3, 1, 2))   # back to NCHW


# ----------------------------- reference + test harness -----------------------------

def ref_forward(x_nchw, p):
    """Pure-JAX f32 reference (same math, NHWC via lax.conv)."""
    x = jnp.transpose(x_nchw, (0, 2, 3, 1)).astype(jnp.float32)

    def conv3(h, w, b):
        y = lax.conv_general_dilated(h, w, (1, 1), "SAME",
                                     dimension_numbers=("NHWC", "HWIO", "NHWC"))
        return y + b

    def bn(y, g, be):
        m = y.mean(axis=(0, 1, 2))
        v = ((y - m) ** 2).mean(axis=(0, 1, 2))
        return g * (y - m) / jnp.sqrt(v + EPS) + be

    o = jnp.maximum(bn(conv3(x, p["w1"], p["b1"]), p["g1"], p["be1"]), 0.0)
    o = bn(conv3(o, p["w2"], p["b2"]), p["g2"], p["be2"])
    s = bn(jnp.einsum("nhwc,co->nhwo", x, p["ws"]), p["gs"], p["bes"])
    return jnp.transpose(jnp.maximum(o + s, 0.0), (0, 3, 1, 2))


def init_params(key, ci, co):
    k1, k2, k3, k4, k5 = jax.random.split(key, 5)
    # conv weights directly in HWIO; BN affine at PyTorch defaults (gamma=1, beta=0)
    return dict(
        w1=0.2 * jax.random.normal(k1, (3, 3, ci, co), jnp.float32),
        b1=0.1 * jax.random.normal(k2, (co,), jnp.float32),
        g1=jnp.ones((co,), jnp.float32), be1=jnp.zeros((co,), jnp.float32),
        w2=0.2 * jax.random.normal(k3, (3, 3, co, co), jnp.float32),
        b2=0.1 * jax.random.normal(k4, (co,), jnp.float32),
        g2=jnp.ones((co,), jnp.float32), be2=jnp.zeros((co,), jnp.float32),
        ws=0.2 * jax.random.normal(k5, (ci, co), jnp.float32),
        gs=jnp.ones((co,), jnp.float32), bes=jnp.zeros((co,), jnp.float32),
    )


if __name__ == "__main__":
    # BasicBlock(in_channels=4, out_channels=8, stride=1, downsample=True)
    N, Ci, H, W, Co = 2, 4, 16, 16, 8          # W * Co == 128 -> fully lane-dense output
    key = jax.random.PRNGKey(0)
    kx, kp = jax.random.split(key)
    x = jax.random.normal(kx, (N, Ci, H, W), jnp.float32)   # NCHW, as in PyTorch
    params = init_params(kp, Ci, Co)

    out = jax.jit(basic_block_forward)(x, params)
    out = jax.block_until_ready(out)

    ref = ref_forward(x, params)
    # kernel uses bf16 matmul operands (f32 accumulate); reference is all-f32
    np.testing.assert_allclose(np.asarray(out), np.asarray(ref), atol=5e-2, rtol=5e-2)
    assert out.shape == (N, Co, H, W)
    print("KERNEL_OK")
</pallas_src>

<mosaic_0001>
module attributes {stable_mosaic.version = 11 : i64} {
  func.func @basic_block_kernel(%arg0: memref<3x32x64xbf16, #tpu.memory_space<vmem>>, %arg1: memref<3x64x128xbf16, #tpu.memory_space<vmem>>, %arg2: memref<3x128x128xbf16, #tpu.memory_space<vmem>>, %arg3: memref<3x32x32xbf16, #tpu.memory_space<vmem>>, %arg4: memref<64x128xbf16, #tpu.memory_space<vmem>>, %arg5: memref<128x128xf32, #tpu.memory_space<vmem>>, %arg6: memref<1x128xf32, #tpu.memory_space<vmem>>, %arg7: memref<1x128xf32, #tpu.memory_space<vmem>>, %arg8: memref<1x128xf32, #tpu.memory_space<vmem>>, %arg9: memref<1x128xf32, #tpu.memory_space<vmem>>, %arg10: memref<1x128xf32, #tpu.memory_space<vmem>>, %arg11: memref<1x128xf32, #tpu.memory_space<vmem>>, %arg12: memref<32x128xf32, #tpu.memory_space<vmem>>) attributes {dimension_semantics = [], scalar_prefetch = 0 : i64, scratch_operands = 0 : i64, tpu.core_type = #tpu.core_type<tc>} {
    %c0 = arith.constant 0 : index
    %c0_0 = arith.constant 0 : index
    %0 = vector.load %arg5[%c0, %c0_0] : memref<128x128xf32, #tpu.memory_space<vmem>>, vector<128x128xf32>
    %c0_1 = arith.constant 0 : index
    %c0_2 = arith.constant 0 : index
    %c0_3 = arith.constant 0 : index
    %1 = vector.load %arg0[%c0_1, %c0_2, %c0_3] : memref<3x32x64xbf16, #tpu.memory_space<vmem>>, vector<1x32x64xbf16>
    %2 = vector.shape_cast %1 : vector<1x32x64xbf16> to vector<32x64xbf16>
    %c0_4 = arith.constant 0 : index
    %c0_5 = arith.constant 0 : index
    %c0_6 = arith.constant 0 : index
    %3 = vector.load %arg1[%c0_4, %c0_5, %c0_6] : memref<3x64x128xbf16, #tpu.memory_space<vmem>>, vector<1x64x128xbf16>
    %4 = vector.shape_cast %3 : vector<1x64x128xbf16> to vector<64x128xbf16>
    %cst = arith.constant dense<0.000000e+00> : vector<32x128xf32>
    %5 = tpu.matmul %2, %4, %cst {dimension_numbers = #tpu.dot_dimension_numbers<[1], [0], [0], [1], [0, 0, 1, 1], [], []>} : vector<32x64xbf16>, vector<64x128xbf16>, vector<32x128xf32> -> vector<32x128xf32>
    %c1 = arith.constant 1 : index
    %c0_7 = arith.constant 0 : index
    %c0_8 = arith.constant 0 : index
    %6 = vector.load %arg0[%c1, %c0_7, %c0_8] : memref<3x32x64xbf16, #tpu.memory_space<vmem>>, vector<1x32x64xbf16>
    %7 = vector.shape_cast %6 : vector<1x32x64xbf16> to vector<32x64xbf16>
    %c1_9 = arith.constant 1 : index
    %c0_10 = arith.constant 0 : index
    %c0_11 = arith.constant 0 : index
    %8 = vector.load %arg1[%c1_9, %c0_10, %c0_11] : memref<3x64x128xbf16, #tpu.memory_space<vmem>>, vector<1x64x128xbf16>
    %9 = vector.shape_cast %8 : vector<1x64x128xbf16> to vector<64x128xbf16>
    %cst_12 = arith.constant dense<0.000000e+00> : vector<32x128xf32>
    %10 = tpu.matmul %7, %9, %cst_12 {dimension_numbers = #tpu.dot_dimension_numbers<[1], [0], [0], [1], [0, 0, 1, 1], [], []>} : vector<32x64xbf16>, vector<64x128xbf16>, vector<32x128xf32> -> vector<32x128xf32>
    %11 = arith.addf %5, %10 : vector<32x128xf32>
    %c2 = arith.constant 2 : index
    %c0_13 = arith.constant 0 : index
    %c0_14 = arith.constant 0 : index
    %12 = vector.load %arg0[%c2, %c0_13, %c0_14] : memref<3x32x64xbf16, #tpu.memory_space<vmem>>, vector<1x32x64xbf16>
    %13 = vector.shape_cast %12 : vector<1x32x64xbf16> to vector<32x64xbf16>
    %c2_15 = arith.constant 2 : index
    %c0_16 = arith.constant 0 : index
    %c0_17 = arith.constant 0 : index
    %14 = vector.load %arg1[%c2_15, %c0_16, %c0_17] : memref<3x64x128xbf16, #tpu.memory_space<vmem>>, vector<1x64x128xbf16>
    %15 = vector.shape_cast %14 : vector<1x64x128xbf16> to vector<64x128xbf16>
    %cst_18 = arith.constant dense<0.000000e+00> : vector<32x128xf32>
    %16 = tpu.matmul %13, %15, %cst_18 {dimension_numbers = #tpu.dot_dimension_numbers<[1], [0], [0], [1], [0, 0, 1, 1], [], []>} : vector<32x64xbf16>, vector<64x128xbf16>, vector<32x128xf32> -> vector<32x128xf32>
    %17 = arith.addf %11, %16 : vector<32x128xf32>
    %c0_19 = arith.constant 0 : index
    %c0_20 = arith.constant 0 : index
    %18 = vector.load %arg6[%c0_19, %c0_20] : memref<1x128xf32, #tpu.memory_space<vmem>>, vector<1x128xf32>
    %c0_21 = arith.constant 0 : index
    %c0_22 = arith.constant 0 : index
    %19 = vector.load %arg7[%c0_21, %c0_22] : memref<1x128xf32, #tpu.memory_space<vmem>>, vector<1x128xf32>
    %cst_23 = arith.constant dense<0.000000e+00> : vector<32x128xf32>
    %20 = tpu.matmul %17, %0, %cst_23 {dimension_numbers = #tpu.dot_dimension_numbers<[1], [0], [0], [1], [0, 0, 1, 1], [], []>} : vector<32x128xf32>, vector<128x128xf32>, vector<32x128xf32> -> vector<32x128xf32>
    %cst_24 = arith.constant dense<0.000000e+00> : vector<128xf32>
    %21 = vector.multi_reduction <add>, %20, %cst_24 [0] : vector<32x128xf32> to vector<128xf32>
    %22 = vector.shape_cast %21 : vector<128xf32> to vector<1x128xf32>
    %cst_25 = arith.constant 0.001953125 : f32
    %23 = vector.broadcast %cst_25 : f32 to vector<1x128xf32>
    %24 = arith.mulf %22, %23 : vector<1x128xf32>
    %25 = arith.mulf %17, %17 : vector<32x128xf32>
    %cst_26 = arith.constant dense<0.000000e+00> : vector<32x128xf32>
    %26 = tpu.matmul %25, %0, %cst_26 {dimension_numbers = #tpu.dot_dimension_numbers<[1], [0], [0], [1], [0, 0, 1, 1], [], []>} : vector<32x128xf32>, vector<128x128xf32>, vector<32x128xf32> -> vector<32x128xf32>
    %cst_27 = arith.constant dense<0.000000e+00> : vector<128xf32>
    %27 = vector.multi_reduction <add>, %26, %cst_27 [0] : vector<32x128xf32> to vector<128xf32>
    %28 = vector.shape_cast %27 : vector<128xf32> to vector<1x128xf32>
    %cst_28 = arith.constant 0.001953125 : f32
    %29 = vector.broadcast %cst_28 : f32 to vector<1x128xf32>
    %30 = arith.mulf %28, %29 : vector<1x128xf32>
    %31 = arith.mulf %24, %24 : vector<1x128xf32>
    %32 = arith.subf %30, %31 : vector<1x128xf32>
    %33 = vector.broadcast %24 : vector<1x128xf32> to vector<32x128xf32>
    %34 = arith.subf %17, %33 : vector<32x128xf32>
    %cst_29 = arith.constant 9.99999974E-6 : f32
    %35 = vector.broadcast %cst_29 : f32 to vector<1x128xf32>
    %36 = arith.addf %32, %35 : vector<1x128xf32>
    %37 = math.rsqrt %36 : vector<1x128xf32>
    %38 = arith.mulf %18, %37 : vector<1x128xf32>
    %39 = vector.broadcast %38 : vector<1x128xf32> to vector<32x128xf32>
    %40 = arith.mulf %34, %39 : vector<32x128xf32>
    %41 = vector.broadcast %19 : vector<1x128xf32> to vector<32x128xf32>
    %42 = arith.addf %40, %41 : vector<32x128xf32>
    %cst_30 = arith.constant 0.000000e+00 : f32
    %43 = vector.broadcast %cst_30 : f32 to vector<32x128xf32>
    %44 = arith.maximumf %42, %43 : vector<32x128xf32>
    %45 = arith.truncf %44 : vector<32x128xf32> to vector<32x128xbf16>
    %c1_31 = arith.constant 1 : index
    %c0_32 = arith.constant 0 : index
    %c0_33 = arith.constant 0 : index
    %46 = vector.load %arg2[%c1_31, %c0_32, %c0_33] : memref<3x128x128xbf16, #tpu.memory_space<vmem>>, vector<1x128x128xbf16>
    %47 = vector.shape_cast %46 : vector<1x128x128xbf16> to vector<128x128xbf16>
    %cst_34 = arith.constant dense<0.000000e+00> : vector<32x128xf32>
    %48 = tpu.matmul %45, %47, %cst_34 {dimension_numbers = #tpu.dot_dimension_numbers<[1], [0], [0], [1], [0, 0, 1, 1], [], []>} : vector<32x128xbf16>, vector<128x128xbf16>, vector<32x128xf32> -> vector<32x128xf32>
    %c0_35 = arith.constant 0 : index
    %c0_36 = arith.constant 0 : index
    %c0_37 = arith.constant 0 : index
    %49 = vector.load %arg3[%c0_35, %c0_36, %c0_37] : memref<3x32x32xbf16, #tpu.memory_space<vmem>>, vector<1x32x32xbf16>
    %50 = vector.shape_cast %49 : vector<1x32x32xbf16> to vector<32x32xbf16>
    %cst_38 = arith.constant dense<0.000000e+00> : vector<32x128xf32>
    %51 = tpu.matmul %50, %45, %cst_38 {dimension_numbers = #tpu.dot_dimension_numbers<[1], [0], [0], [1], [0, 0, 1, 1], [], []>} : vector<32x32xbf16>, vector<32x128xbf16>, vector<32x128xf32> -> vector<32x128xf32>
    %52 = arith.truncf %51 : vector<32x128xf32> to vector<32x128xbf16>
    %c0_39 = arith.constant 0 : index
    %c0_40 = arith.constant 0 : index
    %c0_41 = arith.constant 0 : index
    %53 = vector.load %arg2[%c0_39, %c0_40, %c0_41] : memref<3x128x128xbf16, #tpu.memory_space<vmem>>, vector<1x128x128xbf16>
    %54 = vector.shape_cast %53 : vector<1x128x128xbf16> to vector<128x128xbf16>
    %cst_42 = arith.constant dense<0.000000e+00> : vector<32x128xf32>
    %55 = tpu.matmul %52, %54, %cst_42 {dimension_numbers = #tpu.dot_dimension_numbers<[1], [0], [0], [1], [0, 0, 1, 1], [], []>} : vector<32x128xbf16>, vector<128x128xbf16>, vector<32x128xf32> -> vector<32x128xf32>
    %56 = arith.addf %48, %55 : vector<32x128xf32>
    %c2_43 = arith.constant 2 : index
    %c0_44 = arith.constant 0 : index
    %c0_45 = arith.constant 0 : index
    %57 = vector.load %arg3[%c2_43, %c0_44, %c0_45] : memref<3x32x32xbf16, #tpu.memory_space<vmem>>, vector<1x32x32xbf16>
    %58 = vector.shape_cast %57 : vector<1x32x32xbf16> to vector<32x32xbf16>
    %cst_46 = arith.constant dense<0.000000e+00> : vector<32x128xf32>
    %59 = tpu.matmul %58, %45, %cst_46 {dimension_numbers = #tpu.dot_dimension_numbers<[1], [0], [0], [1], [0, 0, 1, 1], [], []>} : vector<32x32xbf16>, vector<32x128xbf16>, vector<32x128xf32> -> vector<32x128xf32>
    %60 = arith.truncf %59 : vector<32x128xf32> to vector<32x128xbf16>
    %c2_47 = arith.constant 2 : index
    %c0_48 = arith.constant 0 : index
    %c0_49 = arith.constant 0 : index
    %61 = vector.load %arg2[%c2_47, %c0_48, %c0_49] : memref<3x128x128xbf16, #tpu.memory_space<vmem>>, vector<1x128x128xbf16>
    %62 = vector.shape_cast %61 : vector<1x128x128xbf16> to vector<128x128xbf16>
    %cst_50 = arith.constant dense<0.000000e+00> : vector<32x128xf32>
    %63 = tpu.matmul %60, %62, %cst_50 {dimension_numbers = #tpu.dot_dimension_numbers<[1], [0], [0], [1], [0, 0, 1, 1], [], []>} : vector<32x128xbf16>, vector<128x128xbf16>, vector<32x128xf32> -> vector<32x128xf32>
    %64 = arith.addf %56, %63 : vector<32x128xf32>
    %c0_51 = arith.constant 0 : index
    %c0_52 = arith.constant 0 : index
    %65 = vector.load %arg8[%c0_51, %c0_52] : memref<1x128xf32, #tpu.memory_space<vmem>>, vector<1x128xf32>
    %c0_53 = arith.constant 0 : index
    %c0_54 = arith.constant 0 : index
    %66 = vector.load %arg9[%c0_53, %c0_54] : memref<1x128xf32, #tpu.memory_space<vmem>>, vector<1x128xf32>
    %cst_55 = arith.constant dense<0.000000e+00> : vector<32x128xf32>
    %67 = tpu.matmul %64, %0, %cst_55 {dimension_numbers = #tpu.dot_dimension_numbers<[1], [0], [0], [1], [0, 0, 1, 1], [], []>} : vector<32x128xf32>, vector<128x128xf32>, vector<32x128xf32> -> vector<32x128xf32>
    %cst_56 = arith.constant dense<0.000000e+00> : vector<128xf32>
    %68 = vector.multi_reduction <add>, %67, %cst_56 [0] : vector<32x128xf32> to vector<128xf32>
    %69 = vector.shape_cast %68 : vector<128xf32> to vector<1x128xf32>
    %cst_57 = arith.constant 0.001953125 : f32
    %70 = vector.broadcast %cst_57 : f32 to vector<1x128xf32>
    %71 = arith.mulf %69, %70 : vector<1x128xf32>
    %72 = arith.mulf %64, %64 : vector<32x128xf32>
    %cst_58 = arith.constant dense<0.000000e+00> : vector<32x128xf32>
    %73 = tpu.matmul %72, %0, %cst_58 {dimension_numbers = #tpu.dot_dimension_numbers<[1], [0], [0], [1], [0, 0, 1, 1], [], []>} : vector<32x128xf32>, vector<128x128xf32>, vector<32x128xf32> -> vector<32x128xf32>
    %cst_59 = arith.constant dense<0.000000e+00> : vector<128xf32>
    %74 = vector.multi_reduction <add>, %73, %cst_59 [0] : vector<32x128xf32> to vector<128xf32>
    %75 = vector.shape_cast %74 : vector<128xf32> to vector<1x128xf32>
    %cst_60 = arith.constant 0.001953125 : f32
    %76 = vector.broadcast %cst_60 : f32 to vector<1x128xf32>
    %77 = arith.mulf %75, %76 : vector<1x128xf32>
    %78 = arith.mulf %71, %71 : vector<1x128xf32>
    %79 = arith.subf %77, %78 : vector<1x128xf32>
    %80 = vector.broadcast %71 : vector<1x128xf32> to vector<32x128xf32>
    %81 = arith.subf %64, %80 : vector<32x128xf32>
    %cst_61 = arith.constant 9.99999974E-6 : f32
    %82 = vector.broadcast %cst_61 : f32 to vector<1x128xf32>
    %83 = arith.addf %79, %82 : vector<1x128xf32>
    %84 = math.rsqrt %83 : vector<1x128xf32>
    %85 = arith.mulf %65, %84 : vector<1x128xf32>
    %86 = vector.broadcast %85 : vector<1x128xf32> to vector<32x128xf32>
    %87 = arith.mulf %81, %86 : vector<32x128xf32>
    %88 = vector.broadcast %66 : vector<1x128xf32> to vector<32x128xf32>
    %89 = arith.addf %87, %88 : vector<32x128xf32>
    %c1_62 = arith.constant 1 : index
    %c0_63 = arith.constant 0 : index
    %c0_64 = arith.constant 0 : index
    %90 = vector.load %arg0[%c1_62, %c0_63, %c0_64] : memref<3x32x64xbf16, #tpu.memory_space<vmem>>, vector<1x32x64xbf16>
    %91 = vector.shape_cast %90 : vector<1x32x64xbf16> to vector<32x64xbf16>
    %c0_65 = arith.constant 0 : index
    %c0_66 = arith.constant 0 : index
    %92 = vector.load %arg4[%c0_65, %c0_66] : memref<64x128xbf16, #tpu.memory_space<vmem>>, vector<64x128xbf16>
    %cst_67 = arith.constant dense<0.000000e+00> : vector<32x128xf32>
    %93 = tpu.matmul %91, %92, %cst_67 {dimension_numbers = #tpu.dot_dimension_numbers<[1], [0], [0], [1], [0, 0, 1, 1], [], []>} : vector<32x64xbf16>, vector<64x128xbf16>, vector<32x128xf32> -> vector<32x128xf32>
    %c0_68 = arith.constant 0 : index
    %c0_69 = arith.constant 0 : index
    %94 = vector.load %arg10[%c0_68, %c0_69] : memref<1x128xf32, #tpu.memory_space<vmem>>, vector<1x128xf32>
    %c0_70 = arith.constant 0 : index
    %c0_71 = arith.constant 0 : index
    %95 = vector.load %arg11[%c0_70, %c0_71] : memref<1x128xf32, #tpu.memory_space<vmem>>, vector<1x128xf32>
    %cst_72 = arith.constant dense<0.000000e+00> : vector<32x128xf32>
    %96 = tpu.matmul %93, %0, %cst_72 {dimension_numbers = #tpu.dot_dimension_numbers<[1], [0], [0], [1], [0, 0, 1, 1], [], []>} : vector<32x128xf32>, vector<128x128xf32>, vector<32x128xf32> -> vector<32x128xf32>
    %cst_73 = arith.constant dense<0.000000e+00> : vector<128xf32>
    %97 = vector.multi_reduction <add>, %96, %cst_73 [0] : vector<32x128xf32> to vector<128xf32>
    %98 = vector.shape_cast %97 : vector<128xf32> to vector<1x128xf32>
    %cst_74 = arith.constant 0.001953125 : f32
    %99 = vector.broadcast %cst_74 : f32 to vector<1x128xf32>
    %100 = arith.mulf %98, %99 : vector<1x128xf32>
    %101 = arith.mulf %93, %93 : vector<32x128xf32>
    %cst_75 = arith.constant dense<0.000000e+00> : vector<32x128xf32>
    %102 = tpu.matmul %101, %0, %cst_75 {dimension_numbers = #tpu.dot_dimension_numbers<[1], [0], [0], [1], [0, 0, 1, 1], [], []>} : vector<32x128xf32>, vector<128x128xf32>, vector<32x128xf32> -> vector<32x128xf32>
    %cst_76 = arith.constant dense<0.000000e+00> : vector<128xf32>
    %103 = vector.multi_reduction <add>, %102, %cst_76 [0] : vector<32x128xf32> to vector<128xf32>
    %104 = vector.shape_cast %103 : vector<128xf32> to vector<1x128xf32>
    %cst_77 = arith.constant 0.001953125 : f32
    %105 = vector.broadcast %cst_77 : f32 to vector<1x128xf32>
    %106 = arith.mulf %104, %105 : vector<1x128xf32>
    %107 = arith.mulf %100, %100 : vector<1x128xf32>
    %108 = arith.subf %106, %107 : vector<1x128xf32>
    %109 = vector.broadcast %100 : vector<1x128xf32> to vector<32x128xf32>
    %110 = arith.subf %93, %109 : vector<32x128xf32>
    %cst_78 = arith.constant 9.99999974E-6 : f32
    %111 = vector.broadcast %cst_78 : f32 to vector<1x128xf32>
    %112 = arith.addf %108, %111 : vector<1x128xf32>
    %113 = math.rsqrt %112 : vector<1x128xf32>
    %114 = arith.mulf %94, %113 : vector<1x128xf32>
    %115 = vector.broadcast %114 : vector<1x128xf32> to vector<32x128xf32>
    %116 = arith.mulf %110, %115 : vector<32x128xf32>
    %117 = vector.broadcast %95 : vector<1x128xf32> to vector<32x128xf32>
    %118 = arith.addf %116, %117 : vector<32x128xf32>
    %119 = arith.addf %89, %118 : vector<32x128xf32>
    %cst_79 = arith.constant 0.000000e+00 : f32
    %120 = vector.broadcast %cst_79 : f32 to vector<32x128xf32>
    %121 = arith.maximumf %119, %120 : vector<32x128xf32>
    %c0_80 = arith.constant 0 : index
    %c0_81 = arith.constant 0 : index
    %122 = vector.load %arg12[%c0_80, %c0_81] : memref<32x128xf32, #tpu.memory_space<vmem>>, vector<32x128xf32>
    tpu.vector_store %arg12[%c0_80, %c0_81], %121 {strides = array<i32>} : memref<32x128xf32, #tpu.memory_space<vmem>>, vector<32x128xf32>,
    return
  }
}

</mosaic_0001>

<llo_original>
// kernel: tile.33
$region0: #{tile.33}
  #allocation0 [shape = 's32[1]{0}', space=sflag, size = 0x4, scoped, tag = 'scoped memory for tile.33']
  %s0 = inlined_call_operand.vmem [shape: f32[8], index: 0, kind: input, shape index: {}]
  %s1 = inlined_call_operand.vmem [shape: f32[16,8], index: 1, kind: output, shape index: {}]
  // Predicated region
  $region2: #{tile.33} parent=0 // pred_check
    _
  $region3: #{tile.33} parent=0 // pred_check_branch
    %3 = sbr.rel (0) target = $region5
  $region4: #{tile.33} parent=0 // pred_region
    _
  $region5: #{tile.33} parent=0 // pred_fallthru
    _
  %v4 = vld [vmem:[%s0] ss:$0 sm:$0xff]
  %5 = vst [vmem:[%s1] sm:$0xff] %v4
  %s6 = scalar_lea.vmem %s1, 8
  %7 = vst [vmem:[%s6] sm:$0xff] %v4

// kernel: tile.34
$region0: #{tile.34}
  %s0 = inlined_call_operand.vmem [shape: f32[16,8], index: 0, kind: input, shape index: {}]
  %s1 = inlined_call_operand.vmem [shape: f32[1,128], index: 1, kind: output, shape index: {}]
  $region1: #{tile.34} parent=0
    #allocation0 [shape = 'u8[4096]{0}', space=vmem, size = 0x1000, scoped, tag = 'scoped mem for output reshape']
    %v2 = vld [vmem:[%s0] sm:$0x1]
    %vm3 = vcmask 64512
    %4 = vst.msk [vmem:[#allocation0] sm:$0x1] %vm3, %v2
    %s5 = scalar_lea.vmem %s0, 15
    %v6 = vld [vmem:[%s5] sm:$0x1]
    %7 = vrot.lane.b32.xlu0 %v6, 120
    %v8 = vpop.permute.xlu0 %7
    %vm9 = vcmask 1048512
    %10 = vst.msk [vmem:[#allocation0] sm:$0x1] %vm9, %v8
    %s11 = scalar_lea.vmem %s0, 14
    %v12 = vld [vmem:[%s11] sm:$0x1]
    %13 = vrot.lane.b32.xlu0 %v12, 112
    %v14 = vpop.permute.xlu0 %13
    %vm15 = vcmask 982912
    %16 = vst.msk [vmem:[#allocation0] sm:$0x1] %vm15, %v14
    %s17 = scalar_lea.vmem %s0, 13
    %v18 = vld [vmem:[%s17] sm:$0x1]
    %19 = vrot.lane.b32.xlu0 %v18, 104
    %v20 = vpop.permute.xlu0 %19
    %vm21 = vcmask 917312
    %22 = vst.msk [vmem:[#allocation0] sm:$0x1] %vm21, %v20
    %s23 = scalar_lea.vmem %s0, 12
    %v24 = vld [vmem:[%s23] sm:$0x1]
    %25 = vrot.lane.b32.xlu0 %v24, 96
    %v26 = vpop.permute.xlu0 %25
    %vm27 = vcmask 851712
    %28 = vst.msk [vmem:[#allocation0] sm:$0x1] %vm27, %v26
    %s29 = scalar_lea.vmem %s0, 11
    %v30 = vld [vmem:[%s29] sm:$0x1]
    %31 = vrot.lane.b32.xlu0 %v30, 88
    %v32 = vpop.permute.xlu0 %31
    %vm33 = vcmask 786112
    %34 = vst.msk [vmem:[#allocation0] sm:$0x1] %vm33, %v32
    %s35 = scalar_lea.vmem %s0, 10
    %v36 = vld [vmem:[%s35] sm:$0x1]
    %37 = vrot.lane.b32.xlu0 %v36, 80
    %v38 = vpop.permute.xlu0 %37
    %vm39 = vcmask 720512
    %40 = vst.msk [vmem:[#allocation0] sm:$0x1] %vm39, %v38
    %s41 = scalar_lea.vmem %s0, 9
    %v42 = vld [vmem:[%s41] sm:$0x1]
    %43 = vrot.lane.b32.xlu0 %v42, 72
    %v44 = vpop.permute.xlu0 %43
    %vm45 = vcmask 654912
    %46 = vst.msk [vmem:[#allocation0] sm:$0x1] %vm45, %v44
    %s47 = scalar_lea.vmem %s0, 8
    %v48 = vld [vmem:[%s47] sm:$0x1]
    %49 = vrot.lane.b32.xlu0 %v48, 64
    %v50 = vpop.permute.xlu0 %49
    %vm51 = vcmask 589312
    %52 = vst.msk [vmem:[#allocation0] sm:$0x1] %vm51, %v50
    %s53 = scalar_lea.vmem %s0, 7
    %v54 = vld [vmem:[%s53] sm:$0x1]
    %55 = vrot.lane.b32.xlu0 %v54, 56
    %v56 = vpop.permute.xlu0 %55
    %vm57 = vcmask 523712
    %58 = vst.msk [vmem:[#allocation0] sm:$0x1] %vm57, %v56
    %s59 = scalar_lea.vmem %s0, 6
    %v60 = vld [vmem:[%s59] sm:$0x1]
    %61 = vrot.lane.b32.xlu0 %v60, 48
    %v62 = vpop.permute.xlu0 %61
    %vm63 = vcmask 458112
    %64 = vst.msk [vmem:[#allocation0] sm:$0x1] %vm63, %v62
    %s65 = scalar_lea.vmem %s0, 5
    %v66 = vld [vmem:[%s65] sm:$0x1]
    %67 = vrot.lane.b32.xlu0 %v66, 40
    %v68 = vpop.permute.xlu0 %67
    %vm69 = vcmask 392512
    %70 = vst.msk [vmem:[#allocation0] sm:$0x1] %vm69, %v68
    %s71 = scalar_lea.vmem %s0, 4
    %v72 = vld [vmem:[%s71] sm:$0x1]
    %73 = vrot.lane.b32.xlu0 %v72, 32
    %v74 = vpop.permute.xlu0 %73
    %vm75 = vcmask 326912
    %76 = vst.msk [vmem:[#allocation0] sm:$0x1] %vm75, %v74
    %s77 = scalar_lea.vmem %s0, 3
    %v78 = vld [vmem:[%s77] sm:$0x1]
    %79 = vrot.lane.b32.xlu0 %v78, 24
    %v80 = vpop.permute.xlu0 %79
    %vm81 = vcmask 261312
    %82 = vst.msk [vmem:[#allocation0] sm:$0x1] %vm81, %v80
    %s83 = scalar_lea.vmem %s0, 2
    %v84 = vld [vmem:[%s83] sm:$0x1]
    %85 = vrot.lane.b32.xlu0 %v84, 16
    %v86 = vpop.permute.xlu0 %85
    %vm87 = vcmask 195712
    %88 = vst.msk [vmem:[#allocation0] sm:$0x1] %vm87, %v86
    %s89 = scalar_lea.vmem %s0, 1
    %v90 = vld [vmem:[%s89] sm:$0x1]
    %91 = vrot.lane.b32.xlu0 %v90, 8
    %v92 = vpop.permute.xlu0 %91
    %vm93 = vcmask 130112
    %94 = vst.msk [vmem:[#allocation0] sm:$0x1] %vm93, %v92
    %s96 = sshllo.u32 0, 1
    %v98 = vld [vmem:[#allocation0] sm:%s96]
    %s99 = sshllo.u32 0, 1
    %100 = vst [vmem:[%s1] sm:%s99] %v98

// kernel: basic_block_forward.1
$region0: #{basic_block_forward.1}
  #allocation0 [shape = 'u32[]', space=smem, size = 0x4, offset = 0x4, fixed_abs, tag = 'smem constant byte address 0x4 - core index']
  #allocation1 [shape = 'u32[144,128]{1,0:T(1,128)}', space=vmem, size = 0x12000, scoped, tag = 'internal scratch']
  %s0 = inlined_call_operand.vmem [shape: bf16[3,32,64], index: 0, kind: input, shape index: {}]
  %s1 = inlined_call_operand.vmem [shape: bf16[3,64,128], index: 1, kind: input, shape index: {}]
  %s2 = inlined_call_operand.vmem [shape: bf16[3,128,128], index: 2, kind: input, shape index: {}]
  %s3 = inlined_call_operand.vmem [shape: bf16[3,32,32], index: 3, kind: input, shape index: {}]
  %s4 = inlined_call_operand.vmem [shape: bf16[64,128], index: 4, kind: input, shape index: {}]
  %s5 = inlined_call_operand.vmem [shape: f32[128,128], index: 5, kind: input, shape index: {}]
  %s6 = inlined_call_operand.vmem [shape: f32[1,128], index: 6, kind: input, shape index: {}]
  %s7 = inlined_call_operand.vmem [shape: f32[1,128], index: 7, kind: input, shape index: {}]
  %s8 = inlined_call_operand.vmem [shape: f32[1,128], index: 8, kind: input, shape index: {}]
  %s9 = inlined_call_operand.vmem [shape: f32[1,128], index: 9, kind: input, shape index: {}]
  %s10 = inlined_call_operand.vmem [shape: f32[1,128], index: 10, kind: input, shape index: {}]
  %s11 = inlined_call_operand.vmem [shape: f32[1,128], index: 11, kind: input, shape index: {}]
  %s12 = inlined_call_operand.vmem [shape: f32[32,128], index: 12, kind: output, shape index: {}]
  %s13 = sld [smem:[#allocation0]]
  $region58: #{basic_block_forward.1} parent=0
    _
  %s15 = ssub.s32 1, %s13
  %s16 = scalar_select 0, %s15, %s13
  // Predicated region
  $region2: #{basic_block_forward.1} parent=0 // pred_check
    _
  $region3: #{basic_block_forward.1} parent=0 // pred_check_branch
    %18 = sbr.rel (0) target = $region5
  $region4: #{basic_block_forward.1} parent=0 // pred_region
    _
  $region5: #{basic_block_forward.1} parent=0 // pred_fallthru
    _
  // Predicated region
  $region6: #{basic_block_forward.1} parent=0 // pred_check
    _
  $region7: #{basic_block_forward.1} parent=0 // pred_check_branch
    %20 = sbr.rel (0) target = $region9
  $region8: #{basic_block_forward.1} parent=0 // pred_region
    _
  $region9: #{basic_block_forward.1} parent=0 // pred_fallthru
    _
  // Predicated region
  $region10: #{basic_block_forward.1} parent=0 // pred_check
    _
  $region11: #{basic_block_forward.1} parent=0 // pred_check_branch
    %22 = sbr.rel (0) target = $region13
  $region12: #{basic_block_forward.1} parent=0 // pred_region
    _
  $region13: #{basic_block_forward.1} parent=0 // pred_fallthru
    _
  // Predicated region
  $region14: #{basic_block_forward.1} parent=0 // pred_check
    _
  $region15: #{basic_block_forward.1} parent=0 // pred_check_branch
    %24 = sbr.rel (0) target = $region17
  $region16: #{basic_block_forward.1} parent=0 // pred_region
    _
  $region17: #{basic_block_forward.1} parent=0 // pred_fallthru
    _
  // Predicated region
  $region18: #{basic_block_forward.1} parent=0 // pred_check
    _
  $region19: #{basic_block_forward.1} parent=0 // pred_check_branch
    %26 = sbr.rel (0) target = $region21
  $region20: #{basic_block_forward.1} parent=0 // pred_region
    _
  $region21: #{basic_block_forward.1} parent=0 // pred_fallthru
    _
  // Predicated region
  $region22: #{basic_block_forward.1} parent=0 // pred_check
    _
  $region23: #{basic_block_forward.1} parent=0 // pred_check_branch
    %28 = sbr.rel (0) target = $region25
  $region24: #{basic_block_forward.1} parent=0 // pred_region
    _
  $region25: #{basic_block_forward.1} parent=0 // pred_fallthru
    _
  // Predicated region
  $region26: #{basic_block_forward.1} parent=0 // pred_check
    _
  $region27: #{basic_block_forward.1} parent=0 // pred_check_branch
    %30 = sbr.rel (0) target = $region29
  $region28: #{basic_block_forward.1} parent=0 // pred_region
    _
  $region29: #{basic_block_forward.1} parent=0 // pred_fallthru
    _
  // Predicated region
  $region30: #{basic_block_forward.1} parent=0 // pred_check
    _
  $region31: #{basic_block_forward.1} parent=0 // pred_check_branch
    %32 = sbr.rel (0) target = $region33
  $region32: #{basic_block_forward.1} parent=0 // pred_region
    _
  $region33: #{basic_block_forward.1} parent=0 // pred_fallthru
    _
  // Predicated region
  $region34: #{basic_block_forward.1} parent=0 // pred_check
    _
  $region35: #{basic_block_forward.1} parent=0 // pred_check_branch
    %34 = sbr.rel (0) target = $region37
  $region36: #{basic_block_forward.1} parent=0 // pred_region
    _
  $region37: #{basic_block_forward.1} parent=0 // pred_fallthru
    _
  // Predicated region
  $region38: #{basic_block_forward.1} parent=0 // pred_check
    _
  $region39: #{basic_block_forward.1} parent=0 // pred_check_branch
    %36 = sbr.rel (0) target = $region41
  $region40: #{basic_block_forward.1} parent=0 // pred_region
    _
  $region41: #{basic_block_forward.1} parent=0 // pred_fallthru
    _
  // Predicated region
  $region42: #{basic_block_forward.1} parent=0 // pred_check
    _
  $region43: #{basic_block_forward.1} parent=0 // pred_check_branch
    %38 = sbr.rel (0) target = $region45
  $region44: #{basic_block_forward.1} parent=0 // pred_region
    _
  $region45: #{basic_block_forward.1} parent=0 // pred_fallthru
    _
  // Predicated region
  $region46: #{basic_block_forward.1} parent=0 // pred_check
    _
  $region47: #{basic_block_forward.1} parent=0 // pred_check_branch
    %40 = sbr.rel (0) target = $region49
  $region48: #{basic_block_forward.1} parent=0 // pred_region
    _
  $region49: #{basic_block_forward.1} parent=0 // pred_fallthru
    _
  %v42 = vld [vmem:[%s5] sm:$0xff]
  %v43 = vld [vmem:[%s5 + $0x8] sm:$0xff]
  %v44 = vld [vmem:[%s5 + $0x10] sm:$0xff]
  %v45 = vld [vmem:[%s5 + $0x18] sm:$0xff]
  %v46 = vld [vmem:[%s5 + $0x20] sm:$0xff]
  %v47 = vld [vmem:[%s5 + $0x28] sm:$0xff]
  %v48 = vld [vmem:[%s5 + $0x30] sm:$0xff]
  %v49 = vld [vmem:[%s5 + $0x38] sm:$0xff]
  %v50 = vld [vmem:[%s5 + $0x40] sm:$0xff]
  %v51 = vld [vmem:[%s5 + $0x48] sm:$0xff]
  %v52 = vld [vmem:[%s5 + $0x50] sm:$0xff]
  %v53 = vld [vmem:[%s5 + $0x58] sm:$0xff]
  %v54 = vld [vmem:[%s5 + $0x60] sm:$0xff]
  %v55 = vld [vmem:[%s5 + $0x68] sm:$0xff]
  %v56 = vld [vmem:[%s5 + $0x70] sm:$0xff]
  %v57 = vld [vmem:[%s5 + $0x78] sm:$0xff]
  %v58 = vld [vmem:[%s0] sm:$0xf]
  %v59 = vld [vmem:[%s0 + $0x4] sm:$0xf]
  %v60 = vld [vmem:[%s0 + $0x8] sm:$0xf]
  %v61 = vld [vmem:[%s0 + $0xc] sm:$0xf]
  %v62 = vld [vmem:[%s1] sm:$0xf]
  %v63 = vld [vmem:[%s1 + $0x4] sm:$0xf]
  %v64 = vld [vmem:[%s1 + $0x8] sm:$0xf]
  %v65 = vld [vmem:[%s1 + $0xc] sm:$0xf]
  %v66 = vld [vmem:[%s1 + $0x10] sm:$0xf]
  %v67 = vld [vmem:[%s1 + $0x14] sm:$0xf]
  %v68 = vld [vmem:[%s1 + $0x18] sm:$0xf]
  %v69 = vld [vmem:[%s1 + $0x1c] sm:$0xf]
  %s70 = scalar_lea.vmem %s0, 16
  %v71 = vld [vmem:[%s70] sm:$0xf]
  %v72 = vld [vmem:[%s70 + $0x4] sm:$0xf]
  %v73 = vld [vmem:[%s70 + $0x8] sm:$0xf]
  %v74 = vld [vmem:[%s70 + $0xc] sm:$0xf]
  %s75 = scalar_lea.vmem %s1, 32
  %v76 = vld [vmem:[%s75] sm:$0xf]
  %v77 = vld [vmem:[%s75 + $0x4] sm:$0xf]
  %v78 = vld [vmem:[%s75 + $0x8] sm:$0xf]
  %v79 = vld [vmem:[%s75 + $0xc] sm:$0xf]
  %v80 = vld [vmem:[%s75 + $0x10] sm:$0xf]
  %v81 = vld [vmem:[%s75 + $0x14] sm:$0xf]
  %v82 = vld [vmem:[%s75 + $0x18] sm:$0xf]
  %v83 = vld [vmem:[%s75 + $0x1c] sm:$0xf]
  %v88 = vunpack.c.l.b16 %v71
  %v89 = vunpack.c.l.b16 %v72
  %v90 = vunpack.c.l.b16 %v73
  %v91 = vunpack.c.l.b16 %v74
  %v92 = vpack.c.b16 %v89, %v88
  %v93 = vpack.c.b16 %v91, %v90
  %v102 = vunpack.c.l.b16 %v76
  %v103 = vunpack.c.l.b16 %v77
  %v104 = vunpack.c.l.b16 %v78
  %v105 = vunpack.c.l.b16 %v79
  %v106 = vunpack.c.l.b16 %v80
  %v107 = vunpack.c.l.b16 %v81
  %v108 = vunpack.c.l.b16 %v82
  %v109 = vunpack.c.l.b16 %v83
  %v110 = vpack.c.b16 %v103, %v102
  %v111 = vpack.c.b16 %v105, %v104
  %v112 = vpack.c.b16 %v107, %v106
  %v113 = vpack.c.b16 %v109, %v108
  %vm118 = vcmask 523264
  %v120 = vsel %vm118, %v92, 0
  %v123 = vsel %vm118, %v93, 0
  %125 = vmatprep.subr.bf16.mxu0 0
  %126 = vmatpush1.bf16.msra.mxu0 %v110
  %127 = vmatprep.subr.bf16.mxu0 0
  %128 = vmatpush1.bf16.msra.mxu0 %v111
  %129 = vmatprep.subr.bf16.mxu0 0
  %130 = vmatpush1.bf16.msra.mxu0 %v112
  %131 = vmatprep.subr.bf16.mxu0 0
  %132 = vmatpush1.bf16.msra.mxu0 %v113
  %133 = vmatprep.subr.bf16.mxu0 0
  %134 = vmatpush1.bf16.msra.mxu0 0
  %135 = vmatprep.subr.bf16.mxu0 0
  %136 = vmatpush1.bf16.msra.mxu0 0
  %137 = vmatprep.subr.bf16.mxu0 0
  %138 = vmatpush1.bf16.msra.mxu0 0
  %139 = vmatprep.subr.bf16.mxu0 0
  %140 = vmatpush1.bf16.msra.mxu0 0
  %141 = vmatprep.subr.bf16.mxu0 0
  %142 = vmatpush1.bf16.msra.mxu0 0
  %143 = vmatprep.subr.bf16.mxu0 0
  %144 = vmatpush1.bf16.msra.mxu0 0
  %145 = vmatprep.subr.bf16.mxu0 0
  %146 = vmatpush1.bf16.msra.mxu0 0
  %147 = vmatprep.subr.bf16.mxu0 0
  %148 = vmatpush1.bf16.msra.mxu0 0
  %149 = vmatprep.subr.bf16.mxu0 0
  %150 = vmatpush1.bf16.msra.mxu0 0
  %151 = vmatprep.subr.bf16.mxu0 0
  %152 = vmatpush1.bf16.msra.mxu0 0
  %153 = vmatprep.subr.bf16.mxu0 0
  %154 = vmatpush1.bf16.msra.mxu0 0
  %155 = vmatprep.subr.bf16.mxu0 0
  %156 = vmatpush1.bf16.msra.mxu0 0
  %157 = vmatprep.mubr.bf16.mxu0 0
  %158 = vmatmul.mubr.bf16.gmra.mrb[0].mxu0 %v120
  %v159 = vpop.f32.mrb[0].mxu0
  %v160 = vadd.f32 0.0, %v159
  %v161 = vpop.f32.mrb[0].mxu0
  %v162 = vpop.f32.mrb[0].mxu0
  %v163 = vadd.f32 0.0, %v162
  %v164 = vpop.f32.mrb[0].mxu0
  %165 = vmatprep.mubr.bf16.mxu0 0
  %166 = vmatmul.mubr.bf16.gmra.mrb[0].mxu0 %v123
  %v167 = vpop.f32.mrb[0].mxu0
  %v168 = vadd.f32 0.0, %v167
  %v169 = vpop.f32.mrb[0].mxu0
  %v170 = vpop.f32.mrb[0].mxu0
  %v171 = vadd.f32 0.0, %v170
  %v172 = vpop.f32.mrb[0].mxu0
  %173 = vdwg.mxu0
  %v178 = vunpack.c.l.b16 %v58
  %v179 = vunpack.c.l.b16 %v59
  %v180 = vunpack.c.l.b16 %v60
  %v181 = vunpack.c.l.b16 %v61
  %v182 = vpack.c.b16 %v179, %v178
  %v183 = vpack.c.b16 %v181, %v180
  %v192 = vunpack.c.l.b16 %v62
  %v193 = vunpack.c.l.b16 %v63
  %v194 = vunpack.c.l.b16 %v64
  %v195 = vunpack.c.l.b16 %v65
  %v196 = vunpack.c.l.b16 %v66
  %v197 = vunpack.c.l.b16 %v67
  %v198 = vunpack.c.l.b16 %v68
  %v199 = vunpack.c.l.b16 %v69
  %v200 = vpack.c.b16 %v193, %v192
  %v201 = vpack.c.b16 %v195, %v194
  %v202 = vpack.c.b16 %v197, %v196
  %v203 = vpack.c.b16 %v199, %v198
  %v209 = vsel %vm118, %v182, 0
  %v212 = vsel %vm118, %v183, 0
  %214 = vmatprep.subr.bf16.mxu0 0
  %215 = vmatpush1.bf16.msra.mxu0 %v200
  %216 = vmatprep.subr.bf16.mxu0 0
  %217 = vmatpush1.bf16.msra.mxu0 %v201
  %218 = vmatprep.subr.bf16.mxu0 0
  %219 = vmatpush1.bf16.msra.mxu0 %v202
  %220 = vmatprep.subr.bf16.mxu0 0
  %221 = vmatpush1.bf16.msra.mxu0 %v203
  %222 = vmatprep.subr.bf16.mxu0 0
  %223 = vmatpush1.bf16.msra.mxu0 0
  %224 = vmatprep.subr.bf16.mxu0 0
  %225 = vmatpush1.bf16.msra.mxu0 0
  %226 = vmatprep.subr.bf16.mxu0 0
  %227 = vmatpush1.bf16.msra.mxu0 0
  %228 = vmatprep.subr.bf16.mxu0 0
  %229 = vmatpush1.bf16.msra.mxu0 0
  %230 = vmatprep.subr.bf16.mxu0 0
  %231 = vmatpush1.bf16.msra.mxu0 0
  %232 = vmatprep.subr.bf16.mxu0 0
  %233 = vmatpush1.bf16.msra.mxu0 0
  %234 = vmatprep.subr.bf16.mxu0 0
  %235 = vmatpush1.bf16.msra.mxu0 0
  %236 = vmatprep.subr.bf16.mxu0 0
  %237 = vmatpush1.bf16.msra.mxu0 0
  %238 = vmatprep.subr.bf16.mxu0 0
  %239 = vmatpush1.bf16.msra.mxu0 0
  %240 = vmatprep.subr.bf16.mxu0 0
  %241 = vmatpush1.bf16.msra.mxu0 0
  %242 = vmatprep.subr.bf16.mxu0 0
  %243 = vmatpush1.bf16.msra.mxu0 0
  %244 = vmatprep.subr.bf16.mxu0 0
  %245 = vmatpush1.bf16.msra.mxu0 0
  %246 = vmatprep.mubr.bf16.mxu0 0
  %247 = vmatmul.mubr.bf16.gmra.mrb[0].mxu0 %v209
  %v248 = vpop.f32.mrb[0].mxu0
  %v249 = vadd.f32 %v160, %v248
  %v250 = vpop.f32.mrb[0].mxu0
  %v251 = vpop.f32.mrb[0].mxu0
  %v252 = vadd.f32 %v163, %v251
  %v253 = vpop.f32.mrb[0].mxu0
  %254 = vmatprep.mubr.bf16.mxu0 0
  %255 = vmatmul.mubr.bf16.gmra.mrb[0].mxu0 %v212
  %v256 = vpop.f32.mrb[0].mxu0
  %v257 = vadd.f32 %v168, %v256
  %v258 = vpop.f32.mrb[0].mxu0
  %v259 = vpop.f32.mrb[0].mxu0
  %v260 = vadd.f32 %v171, %v259
  %v261 = vpop.f32.mrb[0].mxu0
  %262 = vdwg.mxu0
  %s263 = scalar_lea.vmem %s0, 32
  %v264 = vld [vmem:[%s263] sm:$0xf]
  %v265 = vld [vmem:[%s263 + $0x4] sm:$0xf]
  %v266 = vld [vmem:[%s263 + $0x8] sm:$0xf]
  %v267 = vld [vmem:[%s263 + $0xc] sm:$0xf]
  %s268 = scalar_lea.vmem %s1, 64
  %v269 = vld [vmem:[%s268] sm:$0xf]
  %v270 = vld [vmem:[%s268 + $0x4] sm:$0xf]
  %v271 = vld [vmem:[%s268 + $0x8] sm:$0xf]
  %v272 = vld [vmem:[%s268 + $0xc] sm:$0xf]
  %v273 = vld [vmem:[%s268 + $0x10] sm:$0xf]
  %v274 = vld [vmem:[%s268 + $0x14] sm:$0xf]
  %v275 = vld [vmem:[%s268 + $0x18] sm:$0xf]
  %v276 = vld [vmem:[%s268 + $0x1c] sm:$0xf]
  %v281 = vunpack.c.l.b16 %v264
  %v282 = vunpack.c.l.b16 %v265
  %v283 = vunpack.c.l.b16 %v266
  %v284 = vunpack.c.l.b16 %v267
  %v285 = vpack.c.b16 %v282, %v281
  %v286 = vpack.c.b16 %v284, %v283
  %v295 = vunpack.c.l.b16 %v269
  %v296 = vunpack.c.l.b16 %v270
  %v297 = vunpack.c.l.b16 %v271
  %v298 = vunpack.c.l.b16 %v272
  %v299 = vunpack.c.l.b16 %v273
  %v300 = vunpack.c.l.b16 %v274
  %v301 = vunpack.c.l.b16 %v275
  %v302 = vunpack.c.l.b16 %v276
  %v303 = vpack.c.b16 %v296, %v295
  %v304 = vpack.c.b16 %v298, %v297
  %v305 = vpack.c.b16 %v300, %v299
  %v306 = vpack.c.b16 %v302, %v301
  %v312 = vsel %vm118, %v285, 0
  %v315 = vsel %vm118, %v286, 0
  %317 = vmatprep.subr.bf16.mxu0 0
  %318 = vmatpush1.bf16.msra.mxu0 %v303
  %319 = vmatprep.subr.bf16.mxu0 0
  %320 = vmatpush1.bf16.msra.mxu0 %v304
  %321 = vmatprep.subr.bf16.mxu0 0
  %322 = vmatpush1.bf16.msra.mxu0 %v305
  %323 = vmatprep.subr.bf16.mxu0 0
  %324 = vmatpush1.bf16.msra.mxu0 %v306
  %325 = vmatprep.subr.bf16.mxu0 0
  %326 = vmatpush1.bf16.msra.mxu0 0
  %327 = vmatprep.subr.bf16.mxu0 0
  %328 = vmatpush1.bf16.msra.mxu0 0
  %329 = vmatprep.subr.bf16.mxu0 0
  %330 = vmatpush1.bf16.msra.mxu0 0
  %331 = vmatprep.subr.bf16.mxu0 0
  %332 = vmatpush1.bf16.msra.mxu0 0
  %333 = vmatprep.subr.bf16.mxu0 0
  %334 = vmatpush1.bf16.msra.mxu0 0
  %335 = vmatprep.subr.bf16.mxu0 0
  %336 = vmatpush1.bf16.msra.mxu0 0
  %337 = vmatprep.subr.bf16.mxu0 0
  %338 = vmatpush1.bf16.msra.mxu0 0
  %339 = vmatprep.subr.bf16.mxu0 0
  %340 = vmatpush1.bf16.msra.mxu0 0
  %341 = vmatprep.subr.bf16.mxu0 0
  %342 = vmatpush1.bf16.msra.mxu0 0
  %343 = vmatprep.subr.bf16.mxu0 0
  %344 = vmatpush1.bf16.msra.mxu0 0
  %345 = vmatprep.subr.bf16.mxu0 0
  %346 = vmatpush1.bf16.msra.mxu0 0
  %347 = vmatprep.subr.bf16.mxu0 0
  %348 = vmatpush1.bf16.msra.mxu0 0
  %349 = vmatprep.mubr.bf16.mxu0 0
  %350 = vmatmul.mubr.bf16.gmra.mrb[0].mxu0 %v312
  %v351 = vpop.f32.mrb[0].mxu0
  %v352 = vadd.f32 0.0, %v351
  %v353 = vpop.f32.mrb[0].mxu0
  %v354 = vpop.f32.mrb[0].mxu0
  %v355 = vadd.f32 0.0, %v354
  %v356 = vpop.f32.mrb[0].mxu0
  %357 = vmatprep.mubr.bf16.mxu0 0
  %358 = vmatmul.mubr.bf16.gmra.mrb[0].mxu0 %v315
  %v359 = vpop.f32.mrb[0].mxu0
  %v360 = vadd.f32 0.0, %v359
  %v361 = vpop.f32.mrb[0].mxu0
  %v362 = vpop.f32.mrb[0].mxu0
  %v363 = vadd.f32 0.0, %v362
  %v364 = vpop.f32.mrb[0].mxu0
  %365 = vdwg.mxu0
  %v366 = vadd.f32 %v249, %v352
  %v367 = vadd.f32 %v252, %v355
  %v368 = vadd.f32 %v257, %v360
  %v369 = vadd.f32 %v260, %v363
  %v370 = vld [vmem:[%s6] sm:$0x1]
  %v371 = vld [vmem:[%s7] sm:$0x1]
  %372 = vmatprep.subr.mxu0 0.0
  %373 = vmatpush1.msra.mxu0 %v42
  %374 = vmatprep.subr.mxu0 0.0
  %375 = vmatpush1.msra.mxu0 %v43
  %376 = vmatprep.subr.mxu0 0.0
  %377 = vmatpush1.msra.mxu0 %v44
  %378 = vmatprep.subr.mxu0 0.0
  %379 = vmatpush1.msra.mxu0 %v45
  %380 = vmatprep.subr.mxu0 0.0
  %381 = vmatpush1.msra.mxu0 %v46
  %382 = vmatprep.subr.mxu0 0.0
  %383 = vmatpush1.msra.mxu0 %v47
  %384 = vmatprep.subr.mxu0 0.0
  %385 = vmatpush1.msra.mxu0 %v48
  %386 = vmatprep.subr.mxu0 0.0
  %387 = vmatpush1.msra.mxu0 %v49
  %388 = vmatprep.subr.mxu0 0.0
  %389 = vmatpush1.msra.mxu0 %v50
  %390 = vmatprep.subr.mxu0 0.0
  %391 = vmatpush1.msra.mxu0 %v51
  %392 = vmatprep.subr.mxu0 0.0
  %393 = vmatpush1.msra.mxu0 %v52
  %394 = vmatprep.subr.mxu0 0.0
  %395 = vmatpush1.msra.mxu0 %v53
  %396 = vmatprep.subr.mxu0 0.0
  %397 = vmatpush1.msra.mxu0 %v54
  %398 = vmatprep.subr.mxu0 0.0
  %399 = vmatpush1.msra.mxu0 %v55
  %400 = vmatprep.subr.mxu0 0.0
  %401 = vmatpush1.msra.mxu0 %v56
  %402 = vmatprep.subr.mxu0 0.0
  %403 = vmatpush1.msra.mxu0 %v57
  %404 = vmatprep.subr.mxu0 0.0
  %405 = vmatpush1.msra.mxu0 0.0
  %406 = vmatprep.subr.mxu0 0.0
  %407 = vmatpush1.msra.mxu0 0.0
  %408 = vmatprep.subr.mxu0 0.0
  %409 = vmatpush1.msra.mxu0 0.0
  %410 = vmatprep.subr.mxu0 0.0
  %411 = vmatpush1.msra.mxu0 0.0
  %412 = vmatprep.subr.mxu0 0.0
  %413 = vmatpush1.msra.mxu0 0.0
  %414 = vmatprep.subr.mxu0 0.0
  %415 = vmatpush1.msra.mxu0 0.0
  %416 = vmatprep.subr.mxu0 0.0
  %417 = vmatpush1.msra.mxu0 0.0
  %418 = vmatprep.subr.mxu0 0.0
  %419 = vmatpush1.msra.mxu0 0.0
  %420 = vmatprep.subr.mxu0 0.0
  %421 = vmatpush1.msra.mxu0 0.0
  %422 = vmatprep.subr.mxu0 0.0
  %423 = vmatpush1.msra.mxu0 0.0
  %424 = vmatprep.subr.mxu0 0.0
  %425 = vmatpush1.msra.mxu0 0.0
  %426 = vmatprep.subr.mxu0 0.0
  %427 = vmatpush1.msra.mxu0 0.0
  %428 = vmatprep.subr.mxu0 0.0
  %429 = vmatpush1.msra.mxu0 0.0
  %430 = vmatprep.subr.mxu0 0.0
  %431 = vmatpush1.msra.mxu0 0.0
  %432 = vmatprep.subr.mxu0 0.0
  %433 = vmatpush1.msra.mxu0 0.0
  %434 = vmatprep.subr.mxu0 0.0
  %435 = vmatpush1.msra.mxu0 0.0
  %436 = vmatprep.mubr.f32.mxu0 0.0
  %437 = vmatmul.mubr.f32.gmra.mrb[0].mxu0 %v366
  %v438 = vpop.f32.mrb[0].mxu0
  %v439 = vadd.f32 0.0, %v438
  %v440 = vpop.f32.mrb[0].mxu0
  %441 = vmatprep.mubr.f32.mxu0 0.0
  %442 = vmatmul.mubr.f32.gmra.mrb[0].mxu0 %v367
  %v443 = vpop.f32.mrb[0].mxu0
  %v444 = vadd.f32 0.0, %v443
  %v445 = vpop.f32.mrb[0].mxu0
  %446 = vmatprep.mubr.f32.mxu0 0.0
  %447 = vmatmul.mubr.f32.gmra.mrb[0].mxu0 %v368
  %v448 = vpop.f32.mrb[0].mxu0
  %v449 = vadd.f32 0.0, %v448
  %v450 = vpop.f32.mrb[0].mxu0
  %451 = vmatprep.mubr.f32.mxu0 0.0
  %452 = vmatmul.mubr.f32.gmra.mrb[0].mxu0 %v369
  %v453 = vpop.f32.mrb[0].mxu0
  %v454 = vadd.f32 0.0, %v453
  %v455 = vpop.f32.mrb[0].mxu0
  %456 = vdwg.mxu0
  %v457 = vadd.f32 %v439, %v444
  %v458 = vadd.f32 %v457, %v449
  %v459 = vadd.f32 %v458, %v454
  %v460 = vrot.slane %v459, 4
  %v461 = vadd.f32 %v459, %v460
  %v462 = vrot.slane %v461, 2
  %v463 = vadd.f32 %v461, %v462
  %v464 = vrot.slane %v463, 1
  %v465 = vadd.f32 %v463, %v464
  %v466 = vmul.f32 %v465, 0.001953125
  %v467 = vmul.f32 %v366, %v366
  %v468 = vmul.f32 %v367, %v367
  %v469 = vmul.f32 %v368, %v368
  %v470 = vmul.f32 %v369, %v369
  %471 = vmatprep.subr.mxu0 0.0
  %472 = vmatpush1.msra.mxu0 %v42
  %473 = vmatprep.subr.mxu0 0.0
  %474 = vmatpush1.msra.mxu0 %v43
  %475 = vmatprep.subr.mxu0 0.0
  %476 = vmatpush1.msra.mxu0 %v44
  %477 = vmatprep.subr.mxu0 0.0
  %478 = vmatpush1.msra.mxu0 %v45
  %479 = vmatprep.subr.mxu0 0.0
  %480 = vmatpush1.msra.mxu0 %v46
  %481 = vmatprep.subr.mxu0 0.0
  %482 = vmatpush1.msra.mxu0 %v47
  %483 = vmatprep.subr.mxu0 0.0
  %484 = vmatpush1.msra.mxu0 %v48
  %485 = vmatprep.subr.mxu0 0.0
  %486 = vmatpush1.msra.mxu0 %v49
  %487 = vmatprep.subr.mxu0 0.0
  %488 = vmatpush1.msra.mxu0 %v50
  %489 = vmatprep.subr.mxu0 0.0
  %490 = vmatpush1.msra.mxu0 %v51
  %491 = vmatprep.subr.mxu0 0.0
  %492 = vmatpush1.msra.mxu0 %v52
  %493 = vmatprep.subr.mxu0 0.0
  %494 = vmatpush1.msra.mxu0 %v53
  %495 = vmatprep.subr.mxu0 0.0
  %496 = vmatpush1.msra.mxu0 %v54
  %497 = vmatprep.subr.mxu0 0.0
  %498 = vmatpush1.msra.mxu0 %v55
  %499 = vmatprep.subr.mxu0 0.0
  %500 = vmatpush1.msra.mxu0 %v56
  %501 = vmatprep.subr.mxu0 0.0
  %502 = vmatpush1.msra.mxu0 %v57
  %503 = vmatprep.subr.mxu0 0.0
  %504 = vmatpush1.msra.mxu0 0.0
  %505 = vmatprep.subr.mxu0 0.0
  %506 = vmatpush1.msra.mxu0 0.0
  %507 = vmatprep.subr.mxu0 0.0
  %508 = vmatpush1.msra.mxu0 0.0
  %509 = vmatprep.subr.mxu0 0.0
  %510 = vmatpush1.msra.mxu0 0.0
  %511 = vmatprep.subr.mxu0 0.0
  %512 = vmatpush1.msra.mxu0 0.0
  %513 = vmatprep.subr.mxu0 0.0
  %514 = vmatpush1.msra.mxu0 0.0
  %515 = vmatprep.subr.mxu0 0.0
  %516 = vmatpush1.msra.mxu0 0.0
  %517 = vmatprep.subr.mxu0 0.0
  %518 = vmatpush1.msra.mxu0 0.0
  %519 = vmatprep.subr.mxu0 0.0
  %520 = vmatpush1.msra.mxu0 0.0
  %521 = vmatprep.subr.mxu0 0.0
  %522 = vmatpush1.msra.mxu0 0.0
  %523 = vmatprep.subr.mxu0 0.0
  %524 = vmatpush1.msra.mxu0 0.0
  %525 = vmatprep.subr.mxu0 0.0
  %526 = vmatpush1.msra.mxu0 0.0
  %527 = vmatprep.subr.mxu0 0.0
  %528 = vmatpush1.msra.mxu0 0.0
  %529 = vmatprep.subr.mxu0 0.0
  %530 = vmatpush1.msra.mxu0 0.0
  %531 = vmatprep.subr.mxu0 0.0
  %532 = vmatpush1.msra.mxu0 0.0
  %533 = vmatprep.subr.mxu0 0.0
  %534 = vmatpush1.msra.mxu0 0.0
  %535 = vmatprep.mubr.f32.mxu0 0.0
  %536 = vmatmul.mubr.f32.gmra.mrb[0].mxu0 %v467
  %v537 = vpop.f32.mrb[0].mxu0
  %v538 = vadd.f32 0.0, %v537
  %v539 = vpop.f32.mrb[0].mxu0
  %540 = vmatprep.mubr.f32.mxu0 0.0
  %541 = vmatmul.mubr.f32.gmra.mrb[0].mxu0 %v468
  %v542 = vpop.f32.mrb[0].mxu0
  %v543 = vadd.f32 0.0, %v542
  %v544 = vpop.f32.mrb[0].mxu0
  %545 = vmatprep.mubr.f32.mxu0 0.0
  %546 = vmatmul.mubr.f32.gmra.mrb[0].mxu0 %v469
  %v547 = vpop.f32.mrb[0].mxu0
  %v548 = vadd.f32 0.0, %v547
  %v549 = vpop.f32.mrb[0].mxu0
  %550 = vmatprep.mubr.f32.mxu0 0.0
  %551 = vmatmul.mubr.f32.gmra.mrb[0].mxu0 %v470
  %v552 = vpop.f32.mrb[0].mxu0
  %v553 = vadd.f32 0.0, %v552
  %v554 = vpop.f32.mrb[0].mxu0
  %555 = vdwg.mxu0
  %v556 = vadd.f32 %v538, %v543
  %v557 = vadd.f32 %v556, %v548
  %v558 = vadd.f32 %v557, %v553
  %v559 = vrot.slane %v558, 4
  %v560 = vadd.f32 %v558, %v559
  %v561 = vrot.slane %v560, 2
  %v562 = vadd.f32 %v560, %v561
  %v563 = vrot.slane %v562, 1
  %v564 = vadd.f32 %v562, %v563
  %v565 = vmul.f32 %v564, 0.001953125
  %v566 = vmul.f32 %v466, %v466
  %v567 = vsub.f32 %v565, %v566
  %v568 = vsub.f32 %v366, %v466
  %v569 = vsub.f32 %v367, %v466
  %v570 = vsub.f32 %v368, %v466
  %v571 = vsub.f32 %v369, %v466
  %v572 = vadd.f32 %v567, 1e-05
  %v573 = vrsqrt.pop %v572
  %v574 = vmul.f32 %v370, %v573
  %v576 = vlaneseq
  %v577 = vshrl.u32 %v576, 7
  %v578 = vsub.s32 0, %v577
  %v579 = vrot.slane %v574, %v578
  %v581 = vmul.f32 %v568, %v579
  %v582 = vmul.f32 %v569, %v579
  %v583 = vmul.f32 %v570, %v579
  %v584 = vmul.f32 %v571, %v579
  %v586 = vlaneseq
  %v587 = vshrl.u32 %v586, 7
  %v588 = vsub.s32 0, %v587
  %v589 = vrot.slane %v371, %v588
  %v591 = vadd.f32 %v581, %v589
  %v592 = vadd.f32 %v582, %v589
  %v593 = vadd.f32 %v583, %v589
  %v594 = vadd.f32 %v584, %v589
  %v595 = vmax.f32 %v591, 0.0
  %v596 = vmax.f32 %v592, 0.0
  %v597 = vmax.f32 %v593, 0.0
  %v598 = vmax.f32 %v594, 0.0
  %v599 = vpack.c.bf16 %v596, %v595
  %v600 = vpack.c.bf16 %v598, %v597
  %s601 = scalar_lea.vmem %s2, 64
  %v602 = vld [vmem:[%s601] sm:$0xf]
  %v603 = vld [vmem:[%s601 + $0x4] sm:$0xf]
  %v604 = vld [vmem:[%s601 + $0x8] sm:$0xf]
  %v605 = vld [vmem:[%s601 + $0xc] sm:$0xf]
  %v606 = vld [vmem:[%s601 + $0x10] sm:$0xf]
  %v607 = vld [vmem:[%s601 + $0x14] sm:$0xf]
  %v608 = vld [vmem:[%s601 + $0x18] sm:$0xf]
  %v609 = vld [vmem:[%s601 + $0x1c] sm:$0xf]
  %v610 = vld [vmem:[%s601 + $0x20] sm:$0xf]
  %v611 = vld [vmem:[%s601 + $0x24] sm:$0xf]
  %v612 = vld [vmem:[%s601 + $0x28] sm:$0xf]
  %v613 = vld [vmem:[%s601 + $0x2c] sm:$0xf]
  %v614 = vld [vmem:[%s601 + $0x30] sm:$0xf]
  %v615 = vld [vmem:[%s601 + $0x34] sm:$0xf]
  %v616 = vld [vmem:[%s601 + $0x38] sm:$0xf]
  %v617 = vld [vmem:[%s601 + $0x3c] sm:$0xf]
  %v618 = vld [vmem:[%s3] sm:$0xf]
  %v619 = vld [vmem:[%s3 + $0x4] sm:$0xf]
  %v620 = vld [vmem:[%s3 + $0x8] sm:$0xf]
  %v621 = vld [vmem:[%s3 + $0xc] sm:$0xf]
  %v626 = vunpack.c.l.b16 %v618
  %v627 = vunpack.c.l.b16 %v619
  %v628 = vunpack.c.l.b16 %v620
  %v629 = vunpack.c.l.b16 %v621
  %v630 = vpack.c.b16 %v627, %v626
  %v631 = vpack.c.b16 %v629, %v628
  %vm632 = vcmask 261120
  %v634 = vsel %vm632, %v630, 0
  %v637 = vsel %vm632, %v631, 0
  %639 = vmatprep.subr.bf16.mxu0 0
  %640 = vmatpush1.bf16.msra.mxu0 %v599
  %641 = vmatprep.subr.bf16.mxu0 0
  %642 = vmatpush1.bf16.msra.mxu0 %v600
  %643 = vmatprep.subr.bf16.mxu0 0
  %644 = vmatpush1.bf16.msra.mxu0 0
  %645 = vmatprep.subr.bf16.mxu0 0
  %646 = vmatpush1.bf16.msra.mxu0 0
  %647 = vmatprep.subr.bf16.mxu0 0
  %648 = vmatpush1.bf16.msra.mxu0 0
  %649 = vmatprep.subr.bf16.mxu0 0
  %650 = vmatpush1.bf16.msra.mxu0 0
  %651 = vmatprep.subr.bf16.mxu0 0
  %652 = vmatpush1.bf16.msra.mxu0 0
  %653 = vmatprep.subr.bf16.mxu0 0
  %654 = vmatpush1.bf16.msra.mxu0 0
  %655 = vmatprep.subr.bf16.mxu0 0
  %656 = vmatpush1.bf16.msra.mxu0 0
  %657 = vmatprep.subr.bf16.mxu0 0
  %658 = vmatpush1.bf16.msra.mxu0 0
  %659 = vmatprep.subr.bf16.mxu0 0
  %660 = vmatpush1.bf16.msra.mxu0 0
  %661 = vmatprep.subr.bf16.mxu0 0
  %662 = vmatpush1.bf16.msra.mxu0 0
  %663 = vmatprep.subr.bf16.mxu0 0
  %664 = vmatpush1.bf16.msra.mxu0 0
  %665 = vmatprep.subr.bf16.mxu0 0
  %666 = vmatpush1.bf16.msra.mxu0 0
  %667 = vmatprep.subr.bf16.mxu0 0
  %668 = vmatpush1.bf16.msra.mxu0 0
  %669 = vmatprep.subr.bf16.mxu0 0
  %670 = vmatpush1.bf16.msra.mxu0 0
  %671 = vmatprep.mubr.bf16.mxu0 0
  %672 = vmatmul.mubr.bf16.gmra.mrb[0].mxu0 %v634
  %v673 = vpop.f32.mrb[0].mxu0
  %v674 = vadd.f32 0.0, %v673
  %v675 = vpop.f32.mrb[0].mxu0
  %v676 = vpop.f32.mrb[0].mxu0
  %v677 = vadd.f32 0.0, %v676
  %v678 = vpop.f32.mrb[0].mxu0
  %679 = vmatprep.mubr.bf16.mxu0 0
  %680 = vmatmul.mubr.bf16.gmra.mrb[0].mxu0 %v637
  %v681 = vpop.f32.mrb[0].mxu0
  %v682 = vadd.f32 0.0, %v681
  %v683 = vpop.f32.mrb[0].mxu0
  %v684 = vpop.f32.mrb[0].mxu0
  %v685 = vadd.f32 0.0, %v684
  %v686 = vpop.f32.mrb[0].mxu0
  %687 = vdwg.mxu0
  %v688 = vpack.c.bf16 %v677, %v674
  %v689 = vpack.c.bf16 %v685, %v682
  %v690 = vld [vmem:[%s2] sm:$0xf]
  %v691 = vld [vmem:[%s2 + $0x4] sm:$0xf]
  %v692 = vld [vmem:[%s2 + $0x8] sm:$0xf]
  %v693 = vld [vmem:[%s2 + $0xc] sm:$0xf]
  %v694 = vld [vmem:[%s2 + $0x10] sm:$0xf]
  %v695 = vld [vmem:[%s2 + $0x14] sm:$0xf]
  %v696 = vld [vmem:[%s2 + $0x18] sm:$0xf]
  %v697 = vld [vmem:[%s2 + $0x1c] sm:$0xf]
  %v698 = vld [vmem:[%s2 + $0x20] sm:$0xf]
  %v699 = vld [vmem:[%s2 + $0x24] sm:$0xf]
  %v700 = vld [vmem:[%s2 + $0x28] sm:$0xf]
  %v701 = vld [vmem:[%s2 + $0x2c] sm:$0xf]
  %v702 = vld [vmem:[%s2 + $0x30] sm:$0xf]
  %v703 = vld [vmem:[%s2 + $0x34] sm:$0xf]
  %v704 = vld [vmem:[%s2 + $0x38] sm:$0xf]
  %v705 = vld [vmem:[%s2 + $0x3c] sm:$0xf]
  %v722 = vunpack.c.l.b16 %v690
  %v723 = vunpack.c.l.b16 %v691
  %v724 = vunpack.c.l.b16 %v692
  %v725 = vunpack.c.l.b16 %v693
  %v726 = vunpack.c.l.b16 %v694
  %v727 = vunpack.c.l.b16 %v695
  %v728 = vunpack.c.l.b16 %v696
  %v729 = vunpack.c.l.b16 %v697
  %v730 = vunpack.c.l.b16 %v698
  %v731 = vunpack.c.l.b16 %v699
  %v732 = vunpack.c.l.b16 %v700
  %v733 = vunpack.c.l.b16 %v701
  %v734 = vunpack.c.l.b16 %v702
  %v735 = vunpack.c.l.b16 %v703
  %v736 = vunpack.c.l.b16 %v704
  %v737 = vunpack.c.l.b16 %v705
  %v738 = vpack.c.b16 %v723, %v722
  %v739 = vpack.c.b16 %v725, %v724
  %v740 = vpack.c.b16 %v727, %v726
  %v741 = vpack.c.b16 %v729, %v728
  %v742 = vpack.c.b16 %v731, %v730
  %v743 = vpack.c.b16 %v733, %v732
  %v744 = vpack.c.b16 %v735, %v734
  %v745 = vpack.c.b16 %v737, %v736
  %754 = vmatprep.subr.bf16.mxu0 0
  %755 = vmatpush1.bf16.msra.mxu0 %v738
  %756 = vmatprep.subr.bf16.mxu0 0
  %757 = vmatpush1.bf16.msra.mxu0 %v739
  %758 = vmatprep.subr.bf16.mxu0 0
  %759 = vmatpush1.bf16.msra.mxu0 %v740
  %760 = vmatprep.subr.bf16.mxu0 0
  %761 = vmatpush1.bf16.msra.mxu0 %v741
  %762 = vmatprep.subr.bf16.mxu0 0
  %763 = vmatpush1.bf16.msra.mxu0 %v742
  %764 = vmatprep.subr.bf16.mxu0 0
  %765 = vmatpush1.bf16.msra.mxu0 %v743
  %766 = vmatprep.subr.bf16.mxu0 0
  %767 = vmatpush1.bf16.msra.mxu0 %v744
  %768 = vmatprep.subr.bf16.mxu0 0
  %769 = vmatpush1.bf16.msra.mxu0 %v745
  %770 = vmatprep.subr.bf16.mxu0 0
  %771 = vmatpush1.bf16.msra.mxu0 0
  %772 = vmatprep.subr.bf16.mxu0 0
  %773 = vmatpush1.bf16.msra.mxu0 0
  %774 = vmatprep.subr.bf16.mxu0 0
  %775 = vmatpush1.bf16.msra.mxu0 0
  %776 = vmatprep.subr.bf16.mxu0 0
  %777 = vmatpush1.bf16.msra.mxu0 0
  %778 = vmatprep.subr.bf16.mxu0 0
  %779 = vmatpush1.bf16.msra.mxu0 0
  %780 = vmatprep.subr.bf16.mxu0 0
  %781 = vmatpush1.bf16.msra.mxu0 0
  %782 = vmatprep.subr.bf16.mxu0 0
  %783 = vmatpush1.bf16.msra.mxu0 0
  %784 = vmatprep.subr.bf16.mxu0 0
  %785 = vmatpush1.bf16.msra.mxu0 0
  %786 = vmatprep.mubr.bf16.mxu0 0
  %787 = vmatmul.mubr.bf16.gmra.mrb[0].mxu0 %v688
  %v788 = vpop.f32.mrb[0].mxu0
  %v789 = vadd.f32 0.0, %v788
  %v790 = vpop.f32.mrb[0].mxu0
  %v791 = vpop.f32.mrb[0].mxu0
  %v792 = vadd.f32 0.0, %v791
  %v793 = vpop.f32.mrb[0].mxu0
  %794 = vmatprep.mubr.bf16.mxu0 0
  %795 = vmatmul.mubr.bf16.gmra.mrb[0].mxu0 %v689
  %v796 = vpop.f32.mrb[0].mxu0
  %v797 = vadd.f32 0.0, %v796
  %v798 = vpop.f32.mrb[0].mxu0
  %v799 = vpop.f32.mrb[0].mxu0
  %v800 = vadd.f32 0.0, %v799
  %v801 = vpop.f32.mrb[0].mxu0
  %802 = vdwg.mxu0
  %v819 = vunpack.c.l.b16 %v602
  %v820 = vunpack.c.l.b16 %v603
  %v821 = vunpack.c.l.b16 %v604
  %v822 = vunpack.c.l.b16 %v605
  %v823 = vunpack.c.l.b16 %v606
  %v824 = vunpack.c.l.b16 %v607
  %v825 = vunpack.c.l.b16 %v608
  %v826 = vunpack.c.l.b16 %v609
  %v827 = vunpack.c.l.b16 %v610
  %v828 = vunpack.c.l.b16 %v611
  %v829 = vunpack.c.l.b16 %v612
  %v830 = vunpack.c.l.b16 %v613
  %v831 = vunpack.c.l.b16 %v614
  %v832 = vunpack.c.l.b16 %v615
  %v833 = vunpack.c.l.b16 %v616
  %v834 = vunpack.c.l.b16 %v617
  %v835 = vpack.c.b16 %v820, %v819
  %v836 = vpack.c.b16 %v822, %v821
  %v837 = vpack.c.b16 %v824, %v823
  %v838 = vpack.c.b16 %v826, %v825
  %v839 = vpack.c.b16 %v828, %v827
  %v840 = vpack.c.b16 %v830, %v829
  %v841 = vpack.c.b16 %v832, %v831
  %v842 = vpack.c.b16 %v834, %v833
  %851 = vmatprep.subr.bf16.mxu0 0
  %852 = vmatpush1.bf16.msra.mxu0 %v835
  %853 = vmatprep.subr.bf16.mxu0 0
  %854 = vmatpush1.bf16.msra.mxu0 %v836
  %855 = vmatprep.subr.bf16.mxu0 0
  %856 = vmatpush1.bf16.msra.mxu0 %v837
  %857 = vmatprep.subr.bf16.mxu0 0
  %858 = vmatpush1.bf16.msra.mxu0 %v838
  %859 = vmatprep.subr.bf16.mxu0 0
  %860 = vmatpush1.bf16.msra.mxu0 %v839
  %861 = vmatprep.subr.bf16.mxu0 0
  %862 = vmatpush1.bf16.msra.mxu0 %v840
  %863 = vmatprep.subr.bf16.mxu0 0
  %864 = vmatpush1.bf16.msra.mxu0 %v841
  %865 = vmatprep.subr.bf16.mxu0 0
  %866 = vmatpush1.bf16.msra.mxu0 %v842
  %867 = vmatprep.subr.bf16.mxu0 0
  %868 = vmatpush1.bf16.msra.mxu0 0
  %869 = vmatprep.subr.bf16.mxu0 0
  %870 = vmatpush1.bf16.msra.mxu0 0
  %871 = vmatprep.subr.bf16.mxu0 0
  %872 = vmatpush1.bf16.msra.mxu0 0
  %873 = vmatprep.subr.bf16.mxu0 0
  %874 = vmatpush1.bf16.msra.mxu0 0
  %875 = vmatprep.subr.bf16.mxu0 0
  %876 = vmatpush1.bf16.msra.mxu0 0
  %877 = vmatprep.subr.bf16.mxu0 0
  %878 = vmatpush1.bf16.msra.mxu0 0
  %879 = vmatprep.subr.bf16.mxu0 0
  %880 = vmatpush1.bf16.msra.mxu0 0
  %881 = vmatprep.subr.bf16.mxu0 0
  %882 = vmatpush1.bf16.msra.mxu0 0
  %883 = vmatprep.mubr.bf16.mxu0 0
  %884 = vmatmul.mubr.bf16.gmra.mrb[0].mxu0 %v599
  %v885 = vpop.f32.mrb[0].mxu0
  %v886 = vadd.f32 %v789, %v885
  %v887 = vpop.f32.mrb[0].mxu0
  %v888 = vpop.f32.mrb[0].mxu0
  %v889 = vadd.f32 %v792, %v888
  %v890 = vpop.f32.mrb[0].mxu0
  %891 = vmatprep.mubr.bf16.mxu0 0
  %892 = vmatmul.mubr.bf16.gmra.mrb[0].mxu0 %v600
  %v893 = vpop.f32.mrb[0].mxu0
  %v894 = vadd.f32 %v797, %v893
  %v895 = vpop.f32.mrb[0].mxu0
  %v896 = vpop.f32.mrb[0].mxu0
  %v897 = vadd.f32 %v800, %v896
  %v898 = vpop.f32.mrb[0].mxu0
  %899 = vdwg.mxu0
  %s900 = scalar_lea.vmem %s3, 32
  %v901 = vld [vmem:[%s900] sm:$0xf]
  %v902 = vld [vmem:[%s900 + $0x4] sm:$0xf]
  %v903 = vld [vmem:[%s900 + $0x8] sm:$0xf]
  %v904 = vld [vmem:[%s900 + $0xc] sm:$0xf]
  %v909 = vunpack.c.l.b16 %v901
  %v910 = vunpack.c.l.b16 %v902
  %v911 = vunpack.c.l.b16 %v903
  %v912 = vunpack.c.l.b16 %v904
  %v913 = vpack.c.b16 %v910, %v909
  %v914 = vpack.c.b16 %v912, %v911
  %v916 = vsel %vm632, %v913, 0
  %v919 = vsel %vm632, %v914, 0
  %921 = vmatprep.subr.bf16.mxu0 0
  %922 = vmatpush1.bf16.msra.mxu0 %v599
  %923 = vmatprep.subr.bf16.mxu0 0
  %924 = vmatpush1.bf16.msra.mxu0 %v600
  %925 = vmatprep.subr.bf16.mxu0 0
  %926 = vmatpush1.bf16.msra.mxu0 0
  %927 = vmatprep.subr.bf16.mxu0 0
  %928 = vmatpush1.bf16.msra.mxu0 0
  %929 = vmatprep.subr.bf16.mxu0 0
  %930 = vmatpush1.bf16.msra.mxu0 0
  %931 = vmatprep.subr.bf16.mxu0 0
  %932 = vmatpush1.bf16.msra.mxu0 0
  %933 = vmatprep.subr.bf16.mxu0 0
  %934 = vmatpush1.bf16.msra.mxu0 0
  %935 = vmatprep.subr.bf16.mxu0 0
  %936 = vmatpush1.bf16.msra.mxu0 0
  %937 = vmatprep.subr.bf16.mxu0 0
  %938 = vmatpush1.bf16.msra.mxu0 0
  %939 = vmatprep.subr.bf16.mxu0 0
  %940 = vmatpush1.bf16.msra.mxu0 0
  %941 = vmatprep.subr.bf16.mxu0 0
  %942 = vmatpush1.bf16.msra.mxu0 0
  %943 = vmatprep.subr.bf16.mxu0 0
  %944 = vmatpush1.bf16.msra.mxu0 0
  %945 = vmatprep.subr.bf16.mxu0 0
  %946 = vmatpush1.bf16.msra.mxu0 0
  %947 = vmatprep.subr.bf16.mxu0 0
  %948 = vmatpush1.bf16.msra.mxu0 0
  %949 = vmatprep.subr.bf16.mxu0 0
  %950 = vmatpush1.bf16.msra.mxu0 0
  %951 = vmatprep.subr.bf16.mxu0 0
  %952 = vmatpush1.bf16.msra.mxu0 0
  %953 = vmatprep.mubr.bf16.mxu0 0
  %954 = vmatmul.mubr.bf16.gmra.mrb[0].mxu0 %v916
  %v955 = vpop.f32.mrb[0].mxu0
  %v956 = vadd.f32 0.0, %v955
  %v957 = vpop.f32.mrb[0].mxu0
  %v958 = vpop.f32.mrb[0].mxu0
  %v959 = vadd.f32 0.0, %v958
  %v960 = vpop.f32.mrb[0].mxu0
  %961 = vmatprep.mubr.bf16.mxu0 0
  %962 = vmatmul.mubr.bf16.gmra.mrb[0].mxu0 %v919
  %v963 = vpop.f32.mrb[0].mxu0
  %v964 = vadd.f32 0.0, %v963
  %v965 = vpop.f32.mrb[0].mxu0
  %v966 = vpop.f32.mrb[0].mxu0
  %v967 = vadd.f32 0.0, %v966
  %v968 = vpop.f32.mrb[0].mxu0
  %969 = vdwg.mxu0
  %v970 = vpack.c.bf16 %v959, %v956
  %v971 = vpack.c.bf16 %v967, %v964
  %s972 = scalar_lea.vmem %s2, 128
  %v973 = vld [vmem:[%s972] sm:$0xf]
  %v974 = vld [vmem:[%s972 + $0x4] sm:$0xf]
  %v975 = vld [vmem:[%s972 + $0x8] sm:$0xf]
  %v976 = vld [vmem:[%s972 + $0xc] sm:$0xf]
  %v977 = vld [vmem:[%s972 + $0x10] sm:$0xf]
  %v978 = vld [vmem:[%s972 + $0x14] sm:$0xf]
  %v979 = vld [vmem:[%s972 + $0x18] sm:$0xf]
  %v980 = vld [vmem:[%s972 + $0x1c] sm:$0xf]
  %v981 = vld [vmem:[%s972 + $0x20] sm:$0xf]
  %v982 = vld [vmem:[%s972 + $0x24] sm:$0xf]
  %v983 = vld [vmem:[%s972 + $0x28] sm:$0xf]
  %v984 = vld [vmem:[%s972 + $0x2c] sm:$0xf]
  %v985 = vld [vmem:[%s972 + $0x30] sm:$0xf]
  %v986 = vld [vmem:[%s972 + $0x34] sm:$0xf]
  %v987 = vld [vmem:[%s972 + $0x38] sm:$0xf]
  %v988 = vld [vmem:[%s972 + $0x3c] sm:$0xf]
  %v1005 = vunpack.c.l.b16 %v973
  %v1006 = vunpack.c.l.b16 %v974
  %v1007 = vunpack.c.l.b16 %v975
  %v1008 = vunpack.c.l.b16 %v976
  %v1009 = vunpack.c.l.b16 %v977
  %v1010 = vunpack.c.l.b16 %v978
  %v1011 = vunpack.c.l.b16 %v979
  %v1012 = vunpack.c.l.b16 %v980
  %v1013 = vunpack.c.l.b16 %v981
  %v1014 = vunpack.c.l.b16 %v982
  %v1015 = vunpack.c.l.b16 %v983
  %v1016 = vunpack.c.l.b16 %v984
  %v1017 = vunpack.c.l.b16 %v985
  %v1018 = vunpack.c.l.b16 %v986
  %v1019 = vunpack.c.l.b16 %v987
  %v1020 = vunpack.c.l.b16 %v988
  %v1021 = vpack.c.b16 %v1006, %v1005
  %v1022 = vpack.c.b16 %v1008, %v1007
  %v1023 = vpack.c.b16 %v1010, %v1009
  %v1024 = vpack.c.b16 %v1012, %v1011
  %v1025 = vpack.c.b16 %v1014, %v1013
  %v1026 = vpack.c.b16 %v1016, %v1015
  %v1027 = vpack.c.b16 %v1018, %v1017
  %v1028 = vpack.c.b16 %v1020, %v1019
  %1037 = vmatprep.subr.bf16.mxu0 0
  %1038 = vmatpush1.bf16.msra.mxu0 %v1021
  %1039 = vmatprep.subr.bf16.mxu0 0
  %1040 = vmatpush1.bf16.msra.mxu0 %v1022
  %1041 = vmatprep.subr.bf16.mxu0 0
  %1042 = vmatpush1.bf16.msra.mxu0 %v1023
  %1043 = vmatprep.subr.bf16.mxu0 0
  %1044 = vmatpush1.bf16.msra.mxu0 %v1024
  %1045 = vmatprep.subr.bf16.mxu0 0
  %1046 = vmatpush1.bf16.msra.mxu0 %v1025
  %1047 = vmatprep.subr.bf16.mxu0 0
  %1048 = vmatpush1.bf16.msra.mxu0 %v1026
  %1049 = vmatprep.subr.bf16.mxu0 0
  %1050 = vmatpush1.bf16.msra.mxu0 %v1027
  %1051 = vmatprep.subr.bf16.mxu0 0
  %1052 = vmatpush1.bf16.msra.mxu0 %v1028
  %1053 = vmatprep.subr.bf16.mxu0 0
  %1054 = vmatpush1.bf16.msra.mxu0 0
  %1055 = vmatprep.subr.bf16.mxu0 0
  %1056 = vmatpush1.bf16.msra.mxu0 0
  %1057 = vmatprep.subr.bf16.mxu0 0
  %1058 = vmatpush1.bf16.msra.mxu0 0
  %1059 = vmatprep.subr.bf16.mxu0 0
  %1060 = vmatpush1.bf16.msra.mxu0 0
  %1061 = vmatprep.subr.bf16.mxu0 0
  %1062 = vmatpush1.bf16.msra.mxu0 0
  %1063 = vmatprep.subr.bf16.mxu0 0
  %1064 = vmatpush1.bf16.msra.mxu0 0
  %1065 = vmatprep.subr.bf16.mxu0 0
  %1066 = vmatpush1.bf16.msra.mxu0 0
  %1067 = vmatprep.subr.bf16.mxu0 0
  %1068 = vmatpush1.bf16.msra.mxu0 0
  %1069 = vmatprep.mubr.bf16.mxu0 0
  %1070 = vmatmul.mubr.bf16.gmra.mrb[0].mxu0 %v970
  %v1071 = vpop.f32.mrb[0].mxu0
  %v1072 = vadd.f32 0.0, %v1071
  %v1073 = vpop.f32.mrb[0].mxu0
  %v1074 = vpop.f32.mrb[0].mxu0
  %v1075 = vadd.f32 0.0, %v1074
  %v1076 = vpop.f32.mrb[0].mxu0
  %1077 = vmatprep.mubr.bf16.mxu0 0
  %1078 = vmatmul.mubr.bf16.gmra.mrb[0].mxu0 %v971
  %v1079 = vpop.f32.mrb[0].mxu0
  %v1080 = vadd.f32 0.0, %v1079
  %v1081 = vpop.f32.mrb[0].mxu0
  %v1082 = vpop.f32.mrb[0].mxu0
  %v1083 = vadd.f32 0.0, %v1082
  %v1084 = vpop.f32.mrb[0].mxu0
  %1085 = vdwg.mxu0
  %v1086 = vadd.f32 %v886, %v1072
  %v1087 = vadd.f32 %v889, %v1075
  %v1088 = vadd.f32 %v894, %v1080
  %v1089 = vadd.f32 %v897, %v1083
  %v1090 = vld [vmem:[%s8] sm:$0x1]
  %v1091 = vld [vmem:[%s9] sm:$0x1]
  %1092 = vmatprep.subr.mxu0 0.0
  %1093 = vmatpush1.msra.mxu0 %v42
  %1094 = vmatprep.subr.mxu0 0.0
  %1095 = vmatpush1.msra.mxu0 %v43
  %1096 = vmatprep.subr.mxu0 0.0
  %1097 = vmatpush1.msra.mxu0 %v44
  %1098 = vmatprep.subr.mxu0 0.0
  %1099 = vmatpush1.msra.mxu0 %v45
  %1100 = vmatprep.subr.mxu0 0.0
  %1101 = vmatpush1.msra.mxu0 %v46
  %1102 = vmatprep.subr.mxu0 0.0
  %1103 = vmatpush1.msra.mxu0 %v47
  %1104 = vmatprep.subr.mxu0 0.0
  %1105 = vmatpush1.msra.mxu0 %v48
  %1106 = vmatprep.subr.mxu0 0.0
  %1107 = vmatpush1.msra.mxu0 %v49
  %1108 = vmatprep.subr.mxu0 0.0
  %1109 = vmatpush1.msra.mxu0 %v50
  %1110 = vmatprep.subr.mxu0 0.0
  %1111 = vmatpush1.msra.mxu0 %v51
  %1112 = vmatprep.subr.mxu0 0.0
  %1113 = vmatpush1.msra.mxu0 %v52
  %1114 = vmatprep.subr.mxu0 0.0
  %1115 = vmatpush1.msra.mxu0 %v53
  %1116 = vmatprep.subr.mxu0 0.0
  %1117 = vmatpush1.msra.mxu0 %v54
  %1118 = vmatprep.subr.mxu0 0.0
  %1119 = vmatpush1.msra.mxu0 %v55
  %1120 = vmatprep.subr.mxu0 0.0
  %1121 = vmatpush1.msra.mxu0 %v56
  %1122 = vmatprep.subr.mxu0 0.0
  %1123 = vmatpush1.msra.mxu0 %v57
  %1124 = vmatprep.subr.mxu0 0.0
  %1125 = vmatpush1.msra.mxu0 0.0
  %1126 = vmatprep.subr.mxu0 0.0
  %1127 = vmatpush1.msra.mxu0 0.0
  %1128 = vmatprep.subr.mxu0 0.0
  %1129 = vmatpush1.msra.mxu0 0.0
  %1130 = vmatprep.subr.mxu0 0.0
  %1131 = vmatpush1.msra.mxu0 0.0
  %1132 = vmatprep.subr.mxu0 0.0
  %1133 = vmatpush1.msra.mxu0 0.0
  %1134 = vmatprep.subr.mxu0 0.0
  %1135 = vmatpush1.msra.mxu0 0.0
  %1136 = vmatprep.subr.mxu0 0.0
  %1137 = vmatpush1.msra.mxu0 0.0
  %1138 = vmatprep.subr.mxu0 0.0
  %1139 = vmatpush1.msra.mxu0 0.0
  %1140 = vmatprep.subr.mxu0 0.0
  %1141 = vmatpush1.msra.mxu0 0.0
  %1142 = vmatprep.subr.mxu0 0.0
  %1143 = vmatpush1.msra.mxu0 0.0
  %1144 = vmatprep.subr.mxu0 0.0
  %1145 = vmatpush1.msra.mxu0 0.0
  %1146 = vmatprep.subr.mxu0 0.0
  %1147 = vmatpush1.msra.mxu0 0.0
  %1148 = vmatprep.subr.mxu0 0.0
  %1149 = vmatpush1.msra.mxu0 0.0
  %1150 = vmatprep.subr.mxu0 0.0
  %1151 = vmatpush1.msra.mxu0 0.0
  %1152 = vmatprep.subr.mxu0 0.0
  %1153 = vmatpush1.msra.mxu0 0.0
  %1154 = vmatprep.subr.mxu0 0.0
  %1155 = vmatpush1.msra.mxu0 0.0
  %1156 = vmatprep.mubr.f32.mxu0 0.0
  %1157 = vmatmul.mubr.f32.gmra.mrb[0].mxu0 %v1086
  %v1158 = vpop.f32.mrb[0].mxu0
  %v1159 = vadd.f32 0.0, %v1158
  %v1160 = vpop.f32.mrb[0].mxu0
  %1161 = vmatprep.mubr.f32.mxu0 0.0
  %1162 = vmatmul.mubr.f32.gmra.mrb[0].mxu0 %v1087
  %v1163 = vpop.f32.mrb[0].mxu0
  %v1164 = vadd.f32 0.0, %v1163
  %v1165 = vpop.f32.mrb[0].mxu0
  %1166 = vmatprep.mubr.f32.mxu0 0.0
  %1167 = vmatmul.mubr.f32.gmra.mrb[0].mxu0 %v1088
  %v1168 = vpop.f32.mrb[0].mxu0
  %v1169 = vadd.f32 0.0, %v1168
  %v1170 = vpop.f32.mrb[0].mxu0
  %1171 = vmatprep.mubr.f32.mxu0 0.0
  %1172 = vmatmul.mubr.f32.gmra.mrb[0].mxu0 %v1089
  %v1173 = vpop.f32.mrb[0].mxu0
  %v1174 = vadd.f32 0.0, %v1173
  %v1175 = vpop.f32.mrb[0].mxu0
  %1176 = vdwg.mxu0
  %v1177 = vadd.f32 %v1159, %v1164
  %v1178 = vadd.f32 %v1177, %v1169
  %v1179 = vadd.f32 %v1178, %v1174
  %v1180 = vrot.slane %v1179, 4
  %v1181 = vadd.f32 %v1179, %v1180
  %v1182 = vrot.slane %v1181, 2
  %v1183 = vadd.f32 %v1181, %v1182
  %v1184 = vrot.slane %v1183, 1
  %v1185 = vadd.f32 %v1183, %v1184
  %v1186 = vmul.f32 %v1185, 0.001953125
  %v1187 = vmul.f32 %v1086, %v1086
  %v1188 = vmul.f32 %v1087, %v1087
  %v1189 = vmul.f32 %v1088, %v1088
  %v1190 = vmul.f32 %v1089, %v1089
  %1191 = vmatprep.subr.mxu0 0.0
  %1192 = vmatpush1.msra.mxu0 %v42
  %1193 = vmatprep.subr.mxu0 0.0
  %1194 = vmatpush1.msra.mxu0 %v43
  %1195 = vmatprep.subr.mxu0 0.0
  %1196 = vmatpush1.msra.mxu0 %v44
  %1197 = vmatprep.subr.mxu0 0.0
  %1198 = vmatpush1.msra.mxu0 %v45
  %1199 = vmatprep.subr.mxu0 0.0
  %1200 = vmatpush1.msra.mxu0 %v46
  %1201 = vmatprep.subr.mxu0 0.0
  %1202 = vmatpush1.msra.mxu0 %v47
  %1203 = vmatprep.subr.mxu0 0.0
  %1204 = vmatpush1.msra.mxu0 %v48
  %1205 = vmatprep.subr.mxu0 0.0
  %1206 = vmatpush1.msra.mxu0 %v49
  %1207 = vmatprep.subr.mxu0 0.0
  %1208 = vmatpush1.msra.mxu0 %v50
  %1209 = vmatprep.subr.mxu0 0.0
  %1210 = vmatpush1.msra.mxu0 %v51
  %1211 = vmatprep.subr.mxu0 0.0
  %1212 = vmatpush1.msra.mxu0 %v52
  %1213 = vmatprep.subr.mxu0 0.0
  %1214 = vmatpush1.msra.mxu0 %v53
  %1215 = vmatprep.subr.mxu0 0.0
  %1216 = vmatpush1.msra.mxu0 %v54
  %1217 = vmatprep.subr.mxu0 0.0
  %1218 = vmatpush1.msra.mxu0 %v55
  %1219 = vmatprep.subr.mxu0 0.0
  %1220 = vmatpush1.msra.mxu0 %v56
  %1221 = vmatprep.subr.mxu0 0.0
  %1222 = vmatpush1.msra.mxu0 %v57
  %1223 = vmatprep.subr.mxu0 0.0
  %1224 = vmatpush1.msra.mxu0 0.0
  %1225 = vmatprep.subr.mxu0 0.0
  %1226 = vmatpush1.msra.mxu0 0.0
  %1227 = vmatprep.subr.mxu0 0.0
  %1228 = vmatpush1.msra.mxu0 0.0
  %1229 = vmatprep.subr.mxu0 0.0
  %1230 = vmatpush1.msra.mxu0 0.0
  %1231 = vmatprep.subr.mxu0 0.0
  %1232 = vmatpush1.msra.mxu0 0.0
  %1233 = vmatprep.subr.mxu0 0.0
  %1234 = vmatpush1.msra.mxu0 0.0
  %1235 = vmatprep.subr.mxu0 0.0
  %1236 = vmatpush1.msra.mxu0 0.0
  %1237 = vmatprep.subr.mxu0 0.0
  %1238 = vmatpush1.msra.mxu0 0.0
  %1239 = vmatprep.subr.mxu0 0.0
  %1240 = vmatpush1.msra.mxu0 0.0
  %1241 = vmatprep.subr.mxu0 0.0
  %1242 = vmatpush1.msra.mxu0 0.0
  %1243 = vmatprep.subr.mxu0 0.0
  %1244 = vmatpush1.msra.mxu0 0.0
  %1245 = vmatprep.subr.mxu0 0.0
  %1246 = vmatpush1.msra.mxu0 0.0
  %1247 = vmatprep.subr.mxu0 0.0
  %1248 = vmatpush1.msra.mxu0 0.0
  %1249 = vmatprep.subr.mxu0 0.0
  %1250 = vmatpush1.msra.mxu0 0.0
  %1251 = vmatprep.subr.mxu0 0.0
  %1252 = vmatpush1.msra.mxu0 0.0
  %1253 = vmatprep.subr.mxu0 0.0
  %1254 = vmatpush1.msra.mxu0 0.0
  %1255 = vmatprep.mubr.f32.mxu0 0.0
  %1256 = vmatmul.mubr.f32.gmra.mrb[0].mxu0 %v1187
  %v1257 = vpop.f32.mrb[0].mxu0
  %v1258 = vadd.f32 0.0, %v1257
  %v1259 = vpop.f32.mrb[0].mxu0
  %1260 = vmatprep.mubr.f32.mxu0 0.0
  %1261 = vmatmul.mubr.f32.gmra.mrb[0].mxu0 %v1188
  %v1262 = vpop.f32.mrb[0].mxu0
  %v1263 = vadd.f32 0.0, %v1262
  %v1264 = vpop.f32.mrb[0].mxu0
  %1265 = vmatprep.mubr.f32.mxu0 0.0
  %1266 = vmatmul.mubr.f32.gmra.mrb[0].mxu0 %v1189
  %v1267 = vpop.f32.mrb[0].mxu0
  %v1268 = vadd.f32 0.0, %v1267
  %v1269 = vpop.f32.mrb[0].mxu0
  %1270 = vmatprep.mubr.f32.mxu0 0.0
  %1271 = vmatmul.mubr.f32.gmra.mrb[0].mxu0 %v1190
  %v1272 = vpop.f32.mrb[0].mxu0
  %v1273 = vadd.f32 0.0, %v1272
  %v1274 = vpop.f32.mrb[0].mxu0
  %1275 = vdwg.mxu0
  %v1276 = vadd.f32 %v1258, %v1263
  %v1277 = vadd.f32 %v1276, %v1268
  %v1278 = vadd.f32 %v1277, %v1273
  %v1279 = vrot.slane %v1278, 4
  %v1280 = vadd.f32 %v1278, %v1279
  %v1281 = vrot.slane %v1280, 2
  %v1282 = vadd.f32 %v1280, %v1281
  %v1283 = vrot.slane %v1282, 1
  %v1284 = vadd.f32 %v1282, %v1283
  %v1285 = vmul.f32 %v1284, 0.001953125
  %v1286 = vmul.f32 %v1186, %v1186
  %v1287 = vsub.f32 %v1285, %v1286
  %v1288 = vsub.f32 %v1086, %v1186
  %v1289 = vsub.f32 %v1087, %v1186
  %v1290 = vsub.f32 %v1088, %v1186
  %v1291 = vsub.f32 %v1089, %v1186
  %v1292 = vadd.f32 %v1287, 1e-05
  %v1293 = vrsqrt.pop %v1292
  %v1294 = vmul.f32 %v1090, %v1293
  %v1296 = vlaneseq
  %v1297 = vshrl.u32 %v1296, 7
  %v1298 = vsub.s32 0, %v1297
  %v1299 = vrot.slane %v1294, %v1298
  %v1301 = vmul.f32 %v1288, %v1299
  %v1302 = vmul.f32 %v1289, %v1299
  %v1303 = vmul.f32 %v1290, %v1299
  %v1304 = vmul.f32 %v1291, %v1299
  %v1306 = vlaneseq
  %v1307 = vshrl.u32 %v1306, 7
  %v1308 = vsub.s32 0, %v1307
  %v1309 = vrot.slane %v1091, %v1308
  %v1311 = vadd.f32 %v1301, %v1309
  %v1312 = vadd.f32 %v1302, %v1309
  %v1313 = vadd.f32 %v1303, %v1309
  %v1314 = vadd.f32 %v1304, %v1309
  %v1315 = vld [vmem:[%s4] sm:$0xf]
  %v1316 = vld [vmem:[%s4 + $0x4] sm:$0xf]
  %v1317 = vld [vmem:[%s4 + $0x8] sm:$0xf]
  %v1318 = vld [vmem:[%s4 + $0xc] sm:$0xf]
  %v1319 = vld [vmem:[%s4 + $0x10] sm:$0xf]
  %v1320 = vld [vmem:[%s4 + $0x14] sm:$0xf]
  %v1321 = vld [vmem:[%s4 + $0x18] sm:$0xf]
  %v1322 = vld [vmem:[%s4 + $0x1c] sm:$0xf]
  %v1331 = vunpack.c.l.b16 %v1315
  %v1332 = vunpack.c.l.b16 %v1316
  %v1333 = vunpack.c.l.b16 %v1317
  %v1334 = vunpack.c.l.b16 %v1318
  %v1335 = vunpack.c.l.b16 %v1319
  %v1336 = vunpack.c.l.b16 %v1320
  %v1337 = vunpack.c.l.b16 %v1321
  %v1338 = vunpack.c.l.b16 %v1322
  %v1339 = vpack.c.b16 %v1332, %v1331
  %v1340 = vpack.c.b16 %v1334, %v1333
  %v1341 = vpack.c.b16 %v1336, %v1335
  %v1342 = vpack.c.b16 %v1338, %v1337
  %1347 = vmatprep.subr.bf16.mxu0 0
  %1348 = vmatpush1.bf16.msra.mxu0 %v1339
  %1349 = vmatprep.subr.bf16.mxu0 0
  %1350 = vmatpush1.bf16.msra.mxu0 %v1340
  %1351 = vmatprep.subr.bf16.mxu0 0
  %1352 = vmatpush1.bf16.msra.mxu0 %v1341
  %1353 = vmatprep.subr.bf16.mxu0 0
  %1354 = vmatpush1.bf16.msra.mxu0 %v1342
  %1355 = vmatprep.subr.bf16.mxu0 0
  %1356 = vmatpush1.bf16.msra.mxu0 0
  %1357 = vmatprep.subr.bf16.mxu0 0
  %1358 = vmatpush1.bf16.msra.mxu0 0
  %1359 = vmatprep.subr.bf16.mxu0 0
  %1360 = vmatpush1.bf16.msra.mxu0 0
  %1361 = vmatprep.subr.bf16.mxu0 0
  %1362 = vmatpush1.bf16.msra.mxu0 0
  %1363 = vmatprep.subr.bf16.mxu0 0
  %1364 = vmatpush1.bf16.msra.mxu0 0
  %1365 = vmatprep.subr.bf16.mxu0 0
  %1366 = vmatpush1.bf16.msra.mxu0 0
  %1367 = vmatprep.subr.bf16.mxu0 0
  %1368 = vmatpush1.bf16.msra.mxu0 0
  %1369 = vmatprep.subr.bf16.mxu0 0
  %1370 = vmatpush1.bf16.msra.mxu0 0
  %1371 = vmatprep.subr.bf16.mxu0 0
  %1372 = vmatpush1.bf16.msra.mxu0 0
  %1373 = vmatprep.subr.bf16.mxu0 0
  %1374 = vmatpush1.bf16.msra.mxu0 0
  %1375 = vmatprep.subr.bf16.mxu0 0
  %1376 = vmatpush1.bf16.msra.mxu0 0
  %1377 = vmatprep.subr.bf16.mxu0 0
  %1378 = vmatpush1.bf16.msra.mxu0 0
  %1379 = vmatprep.mubr.bf16.mxu0 0
  %1380 = vmatmul.mubr.bf16.gmra.mrb[0].mxu0 %v120
  %v1381 = vpop.f32.mrb[0].mxu0
  %v1382 = vadd.f32 0.0, %v1381
  %v1383 = vpop.f32.mrb[0].mxu0
  %v1384 = vpop.f32.mrb[0].mxu0
  %v1385 = vadd.f32 0.0, %v1384
  %v1386 = vpop.f32.mrb[0].mxu0
  %1387 = vmatprep.mubr.bf16.mxu0 0
  %1388 = vmatmul.mubr.bf16.gmra.mrb[0].mxu0 %v123
  %v1389 = vpop.f32.mrb[0].mxu0
  %v1390 = vadd.f32 0.0, %v1389
  %v1391 = vpop.f32.mrb[0].mxu0
  %v1392 = vpop.f32.mrb[0].mxu0
  %v1393 = vadd.f32 0.0, %v1392
  %v1394 = vpop.f32.mrb[0].mxu0
  %1395 = vdwg.mxu0
  %v1396 = vld [vmem:[%s10] sm:$0x1]
  %v1397 = vld [vmem:[%s11] sm:$0x1]
  %1398 = vmatprep.subr.mxu0 0.0
  %1399 = vmatpush1.msra.mxu0 %v42
  %1400 = vmatprep.subr.mxu0 0.0
  %1401 = vmatpush1.msra.mxu0 %v43
  %1402 = vmatprep.subr.mxu0 0.0
  %1403 = vmatpush1.msra.mxu0 %v44
  %1404 = vmatprep.subr.mxu0 0.0
  %1405 = vmatpush1.msra.mxu0 %v45
  %1406 = vmatprep.subr.mxu0 0.0
  %1407 = vmatpush1.msra.mxu0 %v46
  %1408 = vmatprep.subr.mxu0 0.0
  %1409 = vmatpush1.msra.mxu0 %v47
  %1410 = vmatprep.subr.mxu0 0.0
  %1411 = vmatpush1.msra.mxu0 %v48
  %1412 = vmatprep.subr.mxu0 0.0
  %1413 = vmatpush1.msra.mxu0 %v49
  %1414 = vmatprep.subr.mxu0 0.0
  %1415 = vmatpush1.msra.mxu0 %v50
  %1416 = vmatprep.subr.mxu0 0.0
  %1417 = vmatpush1.msra.mxu0 %v51
  %1418 = vmatprep.subr.mxu0 0.0
  %1419 = vmatpush1.msra.mxu0 %v52
  %1420 = vmatprep.subr.mxu0 0.0
  %1421 = vmatpush1.msra.mxu0 %v53
  %1422 = vmatprep.subr.mxu0 0.0
  %1423 = vmatpush1.msra.mxu0 %v54
  %1424 = vmatprep.subr.mxu0 0.0
  %1425 = vmatpush1.msra.mxu0 %v55
  %1426 = vmatprep.subr.mxu0 0.0
  %1427 = vmatpush1.msra.mxu0 %v56
  %1428 = vmatprep.subr.mxu0 0.0
  %1429 = vmatpush1.msra.mxu0 %v57
  %1430 = vmatprep.subr.mxu0 0.0
  %1431 = vmatpush1.msra.mxu0 0.0
  %1432 = vmatprep.subr.mxu0 0.0
  %1433 = vmatpush1.msra.mxu0 0.0
  %1434 = vmatprep.subr.mxu0 0.0
  %1435 = vmatpush1.msra.mxu0 0.0
  %1436 = vmatprep.subr.mxu0 0.0
  %1437 = vmatpush1.msra.mxu0 0.0
  %1438 = vmatprep.subr.mxu0 0.0
  %1439 = vmatpush1.msra.mxu0 0.0
  %1440 = vmatprep.subr.mxu0 0.0
  %1441 = vmatpush1.msra.mxu0 0.0
  %1442 = vmatprep.subr.mxu0 0.0
  %1443 = vmatpush1.msra.mxu0 0.0
  %1444 = vmatprep.subr.mxu0 0.0
  %1445 = vmatpush1.msra.mxu0 0.0
  %1446 = vmatprep.subr.mxu0 0.0
  %1447 = vmatpush1.msra.mxu0 0.0
  %1448 = vmatprep.subr.mxu0 0.0
  %1449 = vmatpush1.msra.mxu0 0.0
  %1450 = vmatprep.subr.mxu0 0.0
  %1451 = vmatpush1.msra.mxu0 0.0
  %1452 = vmatprep.subr.mxu0 0.0
  %1453 = vmatpush1.msra.mxu0 0.0
  %1454 = vmatprep.subr.mxu0 0.0
  %1455 = vmatpush1.msra.mxu0 0.0
  %1456 = vmatprep.subr.mxu0 0.0
  %1457 = vmatpush1.msra.mxu0 0.0
  %1458 = vmatprep.subr.mxu0 0.0
  %1459 = vmatpush1.msra.mxu0 0.0
  %1460 = vmatprep.subr.mxu0 0.0
  %1461 = vmatpush1.msra.mxu0 0.0
  %1462 = vmatprep.mubr.f32.mxu0 0.0
  %1463 = vmatmul.mubr.f32.gmra.mrb[0].mxu0 %v1382
  %v1464 = vpop.f32.mrb[0].mxu0
  %v1465 = vadd.f32 0.0, %v1464
  %v1466 = vpop.f32.mrb[0].mxu0
  %1467 = vmatprep.mubr.f32.mxu0 0.0
  %1468 = vmatmul.mubr.f32.gmra.mrb[0].mxu0 %v1385
  %v1469 = vpop.f32.mrb[0].mxu0
  %v1470 = vadd.f32 0.0, %v1469
  %v1471 = vpop.f32.mrb[0].mxu0
  %1472 = vmatprep.mubr.f32.mxu0 0.0
  %1473 = vmatmul.mubr.f32.gmra.mrb[0].mxu0 %v1390
  %v1474 = vpop.f32.mrb[0].mxu0
  %v1475 = vadd.f32 0.0, %v1474
  %v1476 = vpop.f32.mrb[0].mxu0
  %1477 = vmatprep.mubr.f32.mxu0 0.0
  %1478 = vmatmul.mubr.f32.gmra.mrb[0].mxu0 %v1393
  %v1479 = vpop.f32.mrb[0].mxu0
  %v1480 = vadd.f32 0.0, %v1479
  %v1481 = vpop.f32.mrb[0].mxu0
  %1482 = vdwg.mxu0
  %v1483 = vadd.f32 %v1465, %v1470
  %v1484 = vadd.f32 %v1483, %v1475
  %v1485 = vadd.f32 %v1484, %v1480
  %v1486 = vrot.slane %v1485, 4
  %v1487 = vadd.f32 %v1485, %v1486
  %v1488 = vrot.slane %v1487, 2
  %v1489 = vadd.f32 %v1487, %v1488
  %v1490 = vrot.slane %v1489, 1
  %v1491 = vadd.f32 %v1489, %v1490
  %v1492 = vmul.f32 %v1491, 0.001953125
  %v1493 = vmul.f32 %v1382, %v1382
  %v1494 = vmul.f32 %v1385, %v1385
  %v1495 = vmul.f32 %v1390, %v1390
  %v1496 = vmul.f32 %v1393, %v1393
  %1497 = vmatprep.subr.mxu0 0.0
  %1498 = vmatpush1.msra.mxu0 %v42
  %1499 = vmatprep.subr.mxu0 0.0
  %1500 = vmatpush1.msra.mxu0 %v43
  %1501 = vmatprep.subr.mxu0 0.0
  %1502 = vmatpush1.msra.mxu0 %v44
  %1503 = vmatprep.subr.mxu0 0.0
  %1504 = vmatpush1.msra.mxu0 %v45
  %1505 = vmatprep.subr.mxu0 0.0
  %1506 = vmatpush1.msra.mxu0 %v46
  %1507 = vmatprep.subr.mxu0 0.0
  %1508 = vmatpush1.msra.mxu0 %v47
  %1509 = vmatprep.subr.mxu0 0.0
  %1510 = vmatpush1.msra.mxu0 %v48
  %1511 = vmatprep.subr.mxu0 0.0
  %1512 = vmatpush1.msra.mxu0 %v49
  %1513 = vmatprep.subr.mxu0 0.0
  %1514 = vmatpush1.msra.mxu0 %v50
  %1515 = vmatprep.subr.mxu0 0.0
  %1516 = vmatpush1.msra.mxu0 %v51
  %1517 = vmatprep.subr.mxu0 0.0
  %1518 = vmatpush1.msra.mxu0 %v52
  %1519 = vmatprep.subr.mxu0 0.0
  %1520 = vmatpush1.msra.mxu0 %v53
  %1521 = vmatprep.subr.mxu0 0.0
  %1522 = vmatpush1.msra.mxu0 %v54
  %1523 = vmatprep.subr.mxu0 0.0
  %1524 = vmatpush1.msra.mxu0 %v55
  %1525 = vmatprep.subr.mxu0 0.0
  %1526 = vmatpush1.msra.mxu0 %v56
  %1527 = vmatprep.subr.mxu0 0.0
  %1528 = vmatpush1.msra.mxu0 %v57
  %1529 = vmatprep.subr.mxu0 0.0
  %1530 = vmatpush1.msra.mxu0 0.0
  %1531 = vmatprep.subr.mxu0 0.0
  %1532 = vmatpush1.msra.mxu0 0.0
  %1533 = vmatprep.subr.mxu0 0.0
  %1534 = vmatpush1.msra.mxu0 0.0
  %1535 = vmatprep.subr.mxu0 0.0
  %1536 = vmatpush1.msra.mxu0 0.0
  %1537 = vmatprep.subr.mxu0 0.0
  %1538 = vmatpush1.msra.mxu0 0.0
  %1539 = vmatprep.subr.mxu0 0.0
  %1540 = vmatpush1.msra.mxu0 0.0
  %1541 = vmatprep.subr.mxu0 0.0
  %1542 = vmatpush1.msra.mxu0 0.0
  %1543 = vmatprep.subr.mxu0 0.0
  %1544 = vmatpush1.msra.mxu0 0.0
  %1545 = vmatprep.subr.mxu0 0.0
  %1546 = vmatpush1.msra.mxu0 0.0
  %1547 = vmatprep.subr.mxu0 0.0
  %1548 = vmatpush1.msra.mxu0 0.0
  %1549 = vmatprep.subr.mxu0 0.0
  %1550 = vmatpush1.msra.mxu0 0.0
  %1551 = vmatprep.subr.mxu0 0.0
  %1552 = vmatpush1.msra.mxu0 0.0
  %1553 = vmatprep.subr.mxu0 0.0
  %1554 = vmatpush1.msra.mxu0 0.0
  %1555 = vmatprep.subr.mxu0 0.0
  %1556 = vmatpush1.msra.mxu0 0.0
  %1557 = vmatprep.subr.mxu0 0.0
  %1558 = vmatpush1.msra.mxu0 0.0
  %1559 = vmatprep.subr.mxu0 0.0
  %1560 = vmatpush1.msra.mxu0 0.0
  %1561 = vmatprep.mubr.f32.mxu0 0.0
  %1562 = vmatmul.mubr.f32.gmra.mrb[0].mxu0 %v1493
  %v1563 = vpop.f32.mrb[0].mxu0
  %v1564 = vadd.f32 0.0, %v1563
  %v1565 = vpop.f32.mrb[0].mxu0
  %1566 = vmatprep.mubr.f32.mxu0 0.0
  %1567 = vmatmul.mubr.f32.gmra.mrb[0].mxu0 %v1494
  %v1568 = vpop.f32.mrb[0].mxu0
  %v1569 = vadd.f32 0.0, %v1568
  %v1570 = vpop.f32.mrb[0].mxu0
  %1571 = vmatprep.mubr.f32.mxu0 0.0
  %1572 = vmatmul.mubr.f32.gmra.mrb[0].mxu0 %v1495
  %v1573 = vpop.f32.mrb[0].mxu0
  %v1574 = vadd.f32 0.0, %v1573
  %v1575 = vpop.f32.mrb[0].mxu0
  %1576 = vmatprep.mubr.f32.mxu0 0.0
  %1577 = vmatmul.mubr.f32.gmra.mrb[0].mxu0 %v1496
  %v1578 = vpop.f32.mrb[0].mxu0
  %v1579 = vadd.f32 0.0, %v1578
  %v1580 = vpop.f32.mrb[0].mxu0
  %1581 = vdwg.mxu0
  %v1582 = vadd.f32 %v1564, %v1569
  %v1583 = vadd.f32 %v1582, %v1574
  %v1584 = vadd.f32 %v1583, %v1579
  %v1585 = vrot.slane %v1584, 4
  %v1586 = vadd.f32 %v1584, %v1585
  %v1587 = vrot.slane %v1586, 2
  %v1588 = vadd.f32 %v1586, %v1587
  %v1589 = vrot.slane %v1588, 1
  %v1590 = vadd.f32 %v1588, %v1589
  %v1591 = vmul.f32 %v1590, 0.001953125
  %v1592 = vmul.f32 %v1492, %v1492
  %v1593 = vsub.f32 %v1591, %v1592
  %v1594 = vsub.f32 %v1382, %v1492
  %v1595 = vsub.f32 %v1385, %v1492
  %v1596 = vsub.f32 %v1390, %v1492
  %v1597 = vsub.f32 %v1393, %v1492
  %v1598 = vadd.f32 %v1593, 1e-05
  %v1599 = vrsqrt.pop %v1598
  %v1600 = vmul.f32 %v1396, %v1599
  %v1602 = vlaneseq
  %v1603 = vshrl.u32 %v1602, 7
  %v1604 = vsub.s32 0, %v1603
  %v1605 = vrot.slane %v1600, %v1604
  %v1607 = vmul.f32 %v1594, %v1605
  %v1608 = vmul.f32 %v1595, %v1605
  %v1609 = vmul.f32 %v1596, %v1605
  %v1610 = vmul.f32 %v1597, %v1605
  %v1612 = vlaneseq
  %v1613 = vshrl.u32 %v1612, 7
  %v1614 = vsub.s32 0, %v1613
  %v1615 = vrot.slane %v1397, %v1614
  %v1617 = vadd.f32 %v1607, %v1615
  %v1618 = vadd.f32 %v1608, %v1615
  %v1619 = vadd.f32 %v1609, %v1615
  %v1620 = vadd.f32 %v1610, %v1615
  %v1621 = vadd.f32 %v1311, %v1617
  %v1622 = vadd.f32 %v1312, %v1618
  %v1623 = vadd.f32 %v1313, %v1619
  %v1624 = vadd.f32 %v1314, %v1620
  %v1625 = vmax.f32 %v1621, 0.0
  %v1626 = vmax.f32 %v1622, 0.0
  %v1627 = vmax.f32 %v1623, 0.0
  %v1628 = vmax.f32 %v1624, 0.0
  %1629 = vst [vmem:[%s12] sm:$0xff] %v1625
  %1630 = vst [vmem:[%s12 + $0x8] sm:$0xff] %v1626
  %1631 = vst [vmem:[%s12 + $0x10] sm:$0xff] %v1627
  %1632 = vst [vmem:[%s12 + $0x18] sm:$0xff] %v1628
  // Predicated region
  $region50: #{basic_block_forward.1} parent=0 // pred_check
    _
  $region51: #{basic_block_forward.1} parent=0 // pred_check_branch
    %1634 = sbr.rel (0) target = $region53
  $region52: #{basic_block_forward.1} parent=0 // pred_region
    _
  $region53: #{basic_block_forward.1} parent=0 // pred_fallthru
    _
  // Predicated region
  $region54: #{basic_block_forward.1} parent=0 // pred_check
    _
  $region55: #{basic_block_forward.1} parent=0 // pred_check_branch
    %1636 = sbr.rel (0) target = $region57
  $region56: #{basic_block_forward.1} parent=0 // pred_region
    _
  $region57: #{basic_block_forward.1} parent=0 // pred_fallthru
    _

</llo_original>
